<compile_context>
chip_gen: v6e
topology: v6e:2x2x1
jax: 0.10.0
libtpu: 0.0.40
codegen_flags: <defaults>
</compile_context>

<pallas_src>
import math
from functools import partial

import jax
import jax.numpy as jnp
from jax import lax
from jax.experimental import pallas as pl
from jax.experimental.pallas import tpu as pltpu


def _mha_kernel(q_ref, k_ref, v_ref, wq_ref, wk_ref, wv_ref, wo_ref, mask_ref,
                out_ref, *, n_heads, d_dim):
    """One batch tile: fused full-width projections, per-head softmax attention
    (static unrolled head loop), single fused out-projection + residual."""
    q = q_ref[0]            # (Sq, D1)
    k = k_ref[0]            # (Sk, D2)
    v = v_ref[0]            # (Sk, D2)

    # Full-width projections for ALL heads at once (MXU-friendly).
    # wq is pre-scaled by 1/sqrt(d_dim) on the host.
    q_all = jnp.dot(q, wq_ref[...], preferred_element_type=jnp.float32)  # (Sq, H*d)
    k_all = jnp.dot(k, wk_ref[...], preferred_element_type=jnp.float32)  # (Sk, H*d)
    v_all = jnp.dot(v, wv_ref[...], preferred_element_type=jnp.float32)  # (Sk, H*d)

    # Per-head scaled-dot-product attention (static unroll; n_heads is small).
    ctx_parts = []
    for h in range(n_heads):
        lo = h * d_dim
        hi = lo + d_dim
        q_h = q_all[:, lo:hi]                 # (Sq, d)
        k_h = k_all[:, lo:hi]                 # (Sk, d)
        v_h = v_all[:, lo:hi]                 # (Sk, d)

        # Contract last dims directly (no explicit transpose of K).
        scores = lax.dot_general(
            q_h, k_h,
            dimension_numbers=(((1,), (1,)), ((), ())),
            preferred_element_type=jnp.float32)           # (Sq, Sk)
        scores = scores + mask_ref[0, h]                   # additive mask

        # Numerically-stable softmax in f32.
        scores = scores - jnp.max(scores, axis=-1, keepdims=True)
        e = jnp.exp(scores)
        inv_denom = pl.reciprocal(jnp.sum(e, axis=-1, keepdims=True), approx=False)
        attn = e * inv_denom

        ctx_parts.append(
            jnp.dot(attn, v_h, preferred_element_type=jnp.float32))  # (Sq, d)

    # Concatenate heads and apply the output projection with ONE matmul,
    # then add the residual; single store into the output block.
    ctx_all = jnp.concatenate(ctx_parts, axis=-1)                    # (Sq, H*d)
    out = q + jnp.dot(ctx_all, wo_ref[...], preferred_element_type=jnp.float32)
    out_ref[0] = out.astype(out_ref.dtype)


def multi_head_attention(Q, K, V, attn_mask, W_Q, W_K, W_V, W_out,
                         *, n_heads, d_dim):
    """Pallas MultiHeadAttention forward.

    W_Q : (d_dim*n_heads, d_model_1)   -- PyTorch nn.Linear weight layout
    W_K, W_V : (d_dim*n_heads, d_model_2)
    W_out : (d_model_1, n_heads*d_dim)
    """
    B, Sq, D1 = Q.shape
    _, Sk, D2 = K.shape
    Hd = n_heads * d_dim

    # Host-side weight prep (plain JAX glue):
    #   x @ W.T  ->  pass W.T directly; fold the attention scale into W_Q.
    scale = jnp.float32(1.0 / math.sqrt(d_dim))
    wq_full = (W_Q.T * scale).astype(jnp.float32)   # (D1, H*d), pre-scaled
    wk_full = W_K.T.astype(jnp.float32)             # (D2, H*d)
    wv_full = W_V.T.astype(jnp.float32)             # (D2, H*d)
    wo_full = W_out.T.astype(jnp.float32)           # (H*d, D1)

    kernel = partial(_mha_kernel, n_heads=n_heads, d_dim=d_dim)

    grid = (B,)  # head loop fused inside the kernel; only batch on the grid
    return pl.pallas_call(
        kernel,
        out_shape=jax.ShapeDtypeStruct((B, Sq, D1), jnp.float32),
        grid_spec=pltpu.PrefetchScalarGridSpec(
            num_scalar_prefetch=0,
            grid=grid,
            in_specs=[
                pl.BlockSpec((1, Sq, D1), lambda b: (b, 0, 0)),          # Q
                pl.BlockSpec((1, Sk, D2), lambda b: (b, 0, 0)),          # K
                pl.BlockSpec((1, Sk, D2), lambda b: (b, 0, 0)),          # V
                # Weights: full slabs, index independent of grid -> DMA'd once,
                # stay resident in VMEM across all grid steps.
                pl.BlockSpec((D1, Hd), lambda b: (0, 0)),                # W_Q.T (scaled)
                pl.BlockSpec((D2, Hd), lambda b: (0, 0)),                # W_K.T
                pl.BlockSpec((D2, Hd), lambda b: (0, 0)),                # W_V.T
                pl.BlockSpec((Hd, D1), lambda b: (0, 0)),                # W_out.T
                pl.BlockSpec((1, n_heads, Sq, Sk), lambda b: (b, 0, 0, 0)),  # mask
            ],
            out_specs=pl.BlockSpec((1, Sq, D1), lambda b: (b, 0, 0)),
        ),
        compiler_params=pltpu.CompilerParams(
            dimension_semantics=("parallel",)),
    )(Q, K, V, wq_full, wk_full, wv_full, wo_full, attn_mask)


def _reference(Q, K, V, attn_mask, W_Q, W_K, W_V, W_out, *, n_heads, d_dim):
    """Pure-JAX reference mirroring the PyTorch module."""
    B = Q.shape[0]
    q_s = (Q @ W_Q.T).reshape(B, -1, n_heads, d_dim).transpose(0, 2, 1, 3)
    k_s = (K @ W_K.T).reshape(B, -1, n_heads, d_dim).transpose(0, 2, 1, 3)
    v_s = (V @ W_V.T).reshape(B, -1, n_heads, d_dim).transpose(0, 2, 1, 3)
    scores = jnp.einsum("bhqd,bhkd->bhqk", q_s, k_s) / math.sqrt(d_dim) + attn_mask
    attn = jax.nn.softmax(scores, axis=-1)
    ctx = jnp.einsum("bhqk,bhkd->bhqd", attn, v_s)
    ctx = ctx.transpose(0, 2, 1, 3).reshape(B, -1, n_heads * d_dim)
    return ctx @ W_out.T + Q


if __name__ == "__main__":
    # Small shapes consistent with the module.
    batch, seq_q, seq_k = 2, 8, 8
    d_model_1, d_model_2 = 32, 32
    n_heads, d_dim = 4, 8

    key = jax.random.PRNGKey(0)
    kq, kk, kv, km, kwq, kwk, kwv, kwo = jax.random.split(key, 8)

    Q = jax.random.normal(kq, (batch, seq_q, d_model_1), dtype=jnp.float32)
    K = jax.random.normal(kk, (batch, seq_k, d_model_2), dtype=jnp.float32)
    V = jax.random.normal(kv, (batch, seq_k, d_model_2), dtype=jnp.float32)
    # Additive attention mask (e.g. zeros / -1e9); small random additive bias here.
    attn_mask = 0.1 * jax.random.normal(
        km, (batch, n_heads, seq_q, seq_k), dtype=jnp.float32)

    # Deterministic "Linear" weights (PyTorch layout: (out_features, in_features)).
    scale1 = 1.0 / math.sqrt(d_model_1)
    scale2 = 1.0 / math.sqrt(d_model_2)
    W_Q = scale1 * jax.random.normal(kwq, (d_dim * n_heads, d_model_1), jnp.float32)
    W_K = scale2 * jax.random.normal(kwk, (d_dim * n_heads, d_model_2), jnp.float32)
    W_V = scale2 * jax.random.normal(kwv, (d_dim * n_heads, d_model_2), jnp.float32)
    W_out = (1.0 / math.sqrt(n_heads * d_dim)) * jax.random.normal(
        kwo, (d_model_1, n_heads * d_dim), jnp.float32)

    out = multi_head_attention(Q, K, V, attn_mask, W_Q, W_K, W_V, W_out,
                               n_heads=n_heads, d_dim=d_dim)
    out = jax.block_until_ready(out)

    ref = _reference(Q, K, V, attn_mask, W_Q, W_K, W_V, W_out,
                     n_heads=n_heads, d_dim=d_dim)
    assert out.shape == (batch, seq_q, d_model_1)
    assert jnp.allclose(out, ref, atol=1e-4, rtol=1e-4), "mismatch vs reference"

    print("KERNEL_OK")
</pallas_src>

<mosaic_0001>
module attributes {stable_mosaic.version = 11 : i64} {
  func.func @_mha_kernel(%arg0: i32, %arg1: memref<1x8x32xf32, #tpu.memory_space<vmem>>, %arg2: memref<1x8x32xf32, #tpu.memory_space<vmem>>, %arg3: memref<1x8x32xf32, #tpu.memory_space<vmem>>, %arg4: memref<32x32xf32, #tpu.memory_space<vmem>>, %arg5: memref<32x32xf32, #tpu.memory_space<vmem>>, %arg6: memref<32x32xf32, #tpu.memory_space<vmem>>, %arg7: memref<32x32xf32, #tpu.memory_space<vmem>>, %arg8: memref<1x4x8x8xf32, #tpu.memory_space<vmem>>, %arg9: memref<1x8x32xf32, #tpu.memory_space<vmem>>) attributes {dimension_semantics = [#tpu.dimension_semantics<parallel>], iteration_bounds = array<i64: 2>, scalar_prefetch = 0 : i64, scratch_operands = 0 : i64, tpu.core_type = #tpu.core_type<tc>, window_params = [{transform_indices = @transform_0, window_bounds = array<i64: 1, 8, 32>}, {transform_indices = @transform_1, window_bounds = array<i64: 1, 8, 32>}, {transform_indices = @transform_2, window_bounds = array<i64: 1, 8, 32>}, {pipeline_mode = #tpu.pipeline_mode<synchronous>, transform_indices = @transform_3, window_bounds = array<i64: 32, 32>}, {pipeline_mode = #tpu.pipeline_mode<synchronous>, transform_indices = @transform_4, window_bounds = array<i64: 32, 32>}, {pipeline_mode = #tpu.pipeline_mode<synchronous>, transform_indices = @transform_5, window_bounds = array<i64: 32, 32>}, {pipeline_mode = #tpu.pipeline_mode<synchronous>, transform_indices = @transform_6, window_bounds = array<i64: 32, 32>}, {transform_indices = @transform_7, window_bounds = array<i64: 1, 4, 8, 8>}, {transform_indices = @transform_8, window_bounds = array<i64: 1, 8, 32>}]} {
    %c0 = arith.constant 0 : index
    %c0_0 = arith.constant 0 : index
    %c0_1 = arith.constant 0 : index
    %0 = vector.load %arg1[%c0, %c0_0, %c0_1] : memref<1x8x32xf32, #tpu.memory_space<vmem>>, vector<1x8x32xf32>
    %1 = vector.shape_cast %0 : vector<1x8x32xf32> to vector<8x32xf32>
    %c0_2 = arith.constant 0 : index
    %c0_3 = arith.constant 0 : index
    %c0_4 = arith.constant 0 : index
    %2 = vector.load %arg2[%c0_2, %c0_3, %c0_4] : memref<1x8x32xf32, #tpu.memory_space<vmem>>, vector<1x8x32xf32>
    %3 = vector.shape_cast %2 : vector<1x8x32xf32> to vector<8x32xf32>
    %c0_5 = arith.constant 0 : index
    %c0_6 = arith.constant 0 : index
    %c0_7 = arith.constant 0 : index
    %4 = vector.load %arg3[%c0_5, %c0_6, %c0_7] : memref<1x8x32xf32, #tpu.memory_space<vmem>>, vector<1x8x32xf32>
    %5 = vector.shape_cast %4 : vector<1x8x32xf32> to vector<8x32xf32>
    %c0_8 = arith.constant 0 : index
    %c0_9 = arith.constant 0 : index
    %6 = vector.load %arg4[%c0_8, %c0_9] : memref<32x32xf32, #tpu.memory_space<vmem>>, vector<32x32xf32>
    %cst = arith.constant dense<0.000000e+00> : vector<8x32xf32>
    %7 = tpu.matmul %1, %6, %cst {dimension_numbers = #tpu.dot_dimension_numbers<[1], [0], [0], [1], [0, 0, 1, 1], [], []>} : vector<8x32xf32>, vector<32x32xf32>, vector<8x32xf32> -> vector<8x32xf32>
    %c0_10 = arith.constant 0 : index
    %c0_11 = arith.constant 0 : index
    %8 = vector.load %arg5[%c0_10, %c0_11] : memref<32x32xf32, #tpu.memory_space<vmem>>, vector<32x32xf32>
    %cst_12 = arith.constant dense<0.000000e+00> : vector<8x32xf32>
    %9 = tpu.matmul %3, %8, %cst_12 {dimension_numbers = #tpu.dot_dimension_numbers<[1], [0], [0], [1], [0, 0, 1, 1], [], []>} : vector<8x32xf32>, vector<32x32xf32>, vector<8x32xf32> -> vector<8x32xf32>
    %c0_13 = arith.constant 0 : index
    %c0_14 = arith.constant 0 : index
    %10 = vector.load %arg6[%c0_13, %c0_14] : memref<32x32xf32, #tpu.memory_space<vmem>>, vector<32x32xf32>
    %cst_15 = arith.constant dense<0.000000e+00> : vector<8x32xf32>
    %11 = tpu.matmul %5, %10, %cst_15 {dimension_numbers = #tpu.dot_dimension_numbers<[1], [0], [0], [1], [0, 0, 1, 1], [], []>} : vector<8x32xf32>, vector<32x32xf32>, vector<8x32xf32> -> vector<8x32xf32>
    %12 = vector.extract_strided_slice %7 {offsets = [0, 0], sizes = [8, 8], strides = [1, 1]} : vector<8x32xf32> to vector<8x8xf32>
    %13 = vector.extract_strided_slice %9 {offsets = [0, 0], sizes = [8, 8], strides = [1, 1]} : vector<8x32xf32> to vector<8x8xf32>
    %14 = vector.extract_strided_slice %11 {offsets = [0, 0], sizes = [8, 8], strides = [1, 1]} : vector<8x32xf32> to vector<8x8xf32>
    %cst_16 = arith.constant dense<0.000000e+00> : vector<8x8xf32>
    %15 = tpu.matmul %12, %13, %cst_16 {dimension_numbers = #tpu.dot_dimension_numbers<[1], [1], [0], [0], [0, 0, 1, 0], [], []>} : vector<8x8xf32>, vector<8x8xf32>, vector<8x8xf32> -> vector<8x8xf32>
    %c0_17 = arith.constant 0 : index
    %c0_18 = arith.constant 0 : index
    %c0_19 = arith.constant 0 : index
    %c0_20 = arith.constant 0 : index
    %16 = vector.load %arg8[%c0_17, %c0_18, %c0_19, %c0_20] : memref<1x4x8x8xf32, #tpu.memory_space<vmem>>, vector<1x1x8x8xf32>
    %17 = vector.shape_cast %16 : vector<1x1x8x8xf32> to vector<8x8xf32>
    %18 = arith.addf %15, %17 : vector<8x8xf32>
    %cst_21 = arith.constant dense<0xFF800000> : vector<8xf32>
    %19 = vector.multi_reduction <maximumf>, %18, %cst_21 [1] : vector<8x8xf32> to vector<8xf32>
    %20 = vector.shape_cast %19 : vector<8xf32> to vector<8x1xf32>
    %21 = vector.broadcast %20 : vector<8x1xf32> to vector<8x8xf32>
    %22 = arith.subf %18, %21 : vector<8x8xf32>
    %23 = math.exp %22 : vector<8x8xf32>
    %cst_22 = arith.constant dense<0.000000e+00> : vector<8xf32>
    %24 = vector.multi_reduction <add>, %23, %cst_22 [1] : vector<8x8xf32> to vector<8xf32>
    %25 = vector.shape_cast %24 : vector<8xf32> to vector<8x1xf32>
    %26 = tpu.reciprocal %25 : vector<8x1xf32> -> vector<8x1xf32>
    %27 = vector.broadcast %26 : vector<8x1xf32> to vector<8x8xf32>
    %28 = arith.mulf %23, %27 : vector<8x8xf32>
    %cst_23 = arith.constant dense<0.000000e+00> : vector<8x8xf32>
    %29 = tpu.matmul %28, %14, %cst_23 {dimension_numbers = #tpu.dot_dimension_numbers<[1], [0], [0], [1], [0, 0, 1, 1], [], []>} : vector<8x8xf32>, vector<8x8xf32>, vector<8x8xf32> -> vector<8x8xf32>
    %30 = vector.extract_strided_slice %7 {offsets = [0, 8], sizes = [8, 8], strides = [1, 1]} : vector<8x32xf32> to vector<8x8xf32>
    %31 = vector.extract_strided_slice %9 {offsets = [0, 8], sizes = [8, 8], strides = [1, 1]} : vector<8x32xf32> to vector<8x8xf32>
    %32 = vector.extract_strided_slice %11 {offsets = [0, 8], sizes = [8, 8], strides = [1, 1]} : vector<8x32xf32> to vector<8x8xf32>
    %cst_24 = arith.constant dense<0.000000e+00> : vector<8x8xf32>
    %33 = tpu.matmul %30, %31, %cst_24 {dimension_numbers = #tpu.dot_dimension_numbers<[1], [1], [0], [0], [0, 0, 1, 0], [], []>} : vector<8x8xf32>, vector<8x8xf32>, vector<8x8xf32> -> vector<8x8xf32>
    %c0_25 = arith.constant 0 : index
    %c1 = arith.constant 1 : index
    %c0_26 = arith.constant 0 : index
    %c0_27 = arith.constant 0 : index
    %34 = vector.load %arg8[%c0_25, %c1, %c0_26, %c0_27] : memref<1x4x8x8xf32, #tpu.memory_space<vmem>>, vector<1x1x8x8xf32>
    %35 = vector.shape_cast %34 : vector<1x1x8x8xf32> to vector<8x8xf32>
    %36 = arith.addf %33, %35 : vector<8x8xf32>
    %cst_28 = arith.constant dense<0xFF800000> : vector<8xf32>
    %37 = vector.multi_reduction <maximumf>, %36, %cst_28 [1] : vector<8x8xf32> to vector<8xf32>
    %38 = vector.shape_cast %37 : vector<8xf32> to vector<8x1xf32>
    %39 = vector.broadcast %38 : vector<8x1xf32> to vector<8x8xf32>
    %40 = arith.subf %36, %39 : vector<8x8xf32>
    %41 = math.exp %40 : vector<8x8xf32>
    %cst_29 = arith.constant dense<0.000000e+00> : vector<8xf32>
    %42 = vector.multi_reduction <add>, %41, %cst_29 [1] : vector<8x8xf32> to vector<8xf32>
    %43 = vector.shape_cast %42 : vector<8xf32> to vector<8x1xf32>
    %44 = tpu.reciprocal %43 : vector<8x1xf32> -> vector<8x1xf32>
    %45 = vector.broadcast %44 : vector<8x1xf32> to vector<8x8xf32>
    %46 = arith.mulf %41, %45 : vector<8x8xf32>
    %cst_30 = arith.constant dense<0.000000e+00> : vector<8x8xf32>
    %47 = tpu.matmul %46, %32, %cst_30 {dimension_numbers = #tpu.dot_dimension_numbers<[1], [0], [0], [1], [0, 0, 1, 1], [], []>} : vector<8x8xf32>, vector<8x8xf32>, vector<8x8xf32> -> vector<8x8xf32>
    %48 = vector.extract_strided_slice %7 {offsets = [0, 16], sizes = [8, 8], strides = [1, 1]} : vector<8x32xf32> to vector<8x8xf32>
    %49 = vector.extract_strided_slice %9 {offsets = [0, 16], sizes = [8, 8], strides = [1, 1]} : vector<8x32xf32> to vector<8x8xf32>
    %50 = vector.extract_strided_slice %11 {offsets = [0, 16], sizes = [8, 8], strides = [1, 1]} : vector<8x32xf32> to vector<8x8xf32>
    %cst_31 = arith.constant dense<0.000000e+00> : vector<8x8xf32>
    %51 = tpu.matmul %48, %49, %cst_31 {dimension_numbers = #tpu.dot_dimension_numbers<[1], [1], [0], [0], [0, 0, 1, 0], [], []>} : vector<8x8xf32>, vector<8x8xf32>, vector<8x8xf32> -> vector<8x8xf32>
    %c0_32 = arith.constant 0 : index
    %c2 = arith.constant 2 : index
    %c0_33 = arith.constant 0 : index
    %c0_34 = arith.constant 0 : index
    %52 = vector.load %arg8[%c0_32, %c2, %c0_33, %c0_34] : memref<1x4x8x8xf32, #tpu.memory_space<vmem>>, vector<1x1x8x8xf32>
    %53 = vector.shape_cast %52 : vector<1x1x8x8xf32> to vector<8x8xf32>
    %54 = arith.addf %51, %53 : vector<8x8xf32>
    %cst_35 = arith.constant dense<0xFF800000> : vector<8xf32>
    %55 = vector.multi_reduction <maximumf>, %54, %cst_35 [1] : vector<8x8xf32> to vector<8xf32>
    %56 = vector.shape_cast %55 : vector<8xf32> to vector<8x1xf32>
    %57 = vector.broadcast %56 : vector<8x1xf32> to vector<8x8xf32>
    %58 = arith.subf %54, %57 : vector<8x8xf32>
    %59 = math.exp %58 : vector<8x8xf32>
    %cst_36 = arith.constant dense<0.000000e+00> : vector<8xf32>
    %60 = vector.multi_reduction <add>, %59, %cst_36 [1] : vector<8x8xf32> to vector<8xf32>
    %61 = vector.shape_cast %60 : vector<8xf32> to vector<8x1xf32>
    %62 = tpu.reciprocal %61 : vector<8x1xf32> -> vector<8x1xf32>
    %63 = vector.broadcast %62 : vector<8x1xf32> to vector<8x8xf32>
    %64 = arith.mulf %59, %63 : vector<8x8xf32>
    %cst_37 = arith.constant dense<0.000000e+00> : vector<8x8xf32>
    %65 = tpu.matmul %64, %50, %cst_37 {dimension_numbers = #tpu.dot_dimension_numbers<[1], [0], [0], [1], [0, 0, 1, 1], [], []>} : vector<8x8xf32>, vector<8x8xf32>, vector<8x8xf32> -> vector<8x8xf32>
    %66 = vector.extract_strided_slice %7 {offsets = [0, 24], sizes = [8, 8], strides = [1, 1]} : vector<8x32xf32> to vector<8x8xf32>
    %67 = vector.extract_strided_slice %9 {offsets = [0, 24], sizes = [8, 8], strides = [1, 1]} : vector<8x32xf32> to vector<8x8xf32>
    %68 = vector.extract_strided_slice %11 {offsets = [0, 24], sizes = [8, 8], strides = [1, 1]} : vector<8x32xf32> to vector<8x8xf32>
    %cst_38 = arith.constant dense<0.000000e+00> : vector<8x8xf32>
    %69 = tpu.matmul %66, %67, %cst_38 {dimension_numbers = #tpu.dot_dimension_numbers<[1], [1], [0], [0], [0, 0, 1, 0], [], []>} : vector<8x8xf32>, vector<8x8xf32>, vector<8x8xf32> -> vector<8x8xf32>
    %c0_39 = arith.constant 0 : index
    %c3 = arith.constant 3 : index
    %c0_40 = arith.constant 0 : index
    %c0_41 = arith.constant 0 : index
    %70 = vector.load %arg8[%c0_39, %c3, %c0_40, %c0_41] : memref<1x4x8x8xf32, #tpu.memory_space<vmem>>, vector<1x1x8x8xf32>
    %71 = vector.shape_cast %70 : vector<1x1x8x8xf32> to vector<8x8xf32>
    %72 = arith.addf %69, %71 : vector<8x8xf32>
    %cst_42 = arith.constant dense<0xFF800000> : vector<8xf32>
    %73 = vector.multi_reduction <maximumf>, %72, %cst_42 [1] : vector<8x8xf32> to vector<8xf32>
    %74 = vector.shape_cast %73 : vector<8xf32> to vector<8x1xf32>
    %75 = vector.broadcast %74 : vector<8x1xf32> to vector<8x8xf32>
    %76 = arith.subf %72, %75 : vector<8x8xf32>
    %77 = math.exp %76 : vector<8x8xf32>
    %cst_43 = arith.constant dense<0.000000e+00> : vector<8xf32>
    %78 = vector.multi_reduction <add>, %77, %cst_43 [1] : vector<8x8xf32> to vector<8xf32>
    %79 = vector.shape_cast %78 : vector<8xf32> to vector<8x1xf32>
    %80 = tpu.reciprocal %79 : vector<8x1xf32> -> vector<8x1xf32>
    %81 = vector.broadcast %80 : vector<8x1xf32> to vector<8x8xf32>
    %82 = arith.mulf %77, %81 : vector<8x8xf32>
    %cst_44 = arith.constant dense<0.000000e+00> : vector<8x8xf32>
    %83 = tpu.matmul %82, %68, %cst_44 {dimension_numbers = #tpu.dot_dimension_numbers<[1], [0], [0], [1], [0, 0, 1, 1], [], []>} : vector<8x8xf32>, vector<8x8xf32>, vector<8x8xf32> -> vector<8x8xf32>
    %84 = tpu.concatenate %29, %47, %65, %83 in 1 : vector<8x8xf32>, vector<8x8xf32>, vector<8x8xf32>, vector<8x8xf32> -> vector<8x32xf32>
    %c0_45 = arith.constant 0 : index
    %c0_46 = arith.constant 0 : index
    %85 = vector.load %arg7[%c0_45, %c0_46] : memref<32x32xf32, #tpu.memory_space<vmem>>, vector<32x32xf32>
    %cst_47 = arith.constant dense<0.000000e+00> : vector<8x32xf32>
    %86 = tpu.matmul %84, %85, %cst_47 {dimension_numbers = #tpu.dot_dimension_numbers<[1], [0], [0], [1], [0, 0, 1, 1], [], []>} : vector<8x32xf32>, vector<32x32xf32>, vector<8x32xf32> -> vector<8x32xf32>
    %87 = arith.addf %1, %86 : vector<8x32xf32>
    %c0_48 = arith.constant 0 : index
    %c0_49 = arith.constant 0 : index
    %c0_50 = arith.constant 0 : index
    %88 = vector.load %arg9[%c0_48, %c0_49, %c0_50] : memref<1x8x32xf32, #tpu.memory_space<vmem>>, vector<1x8x32xf32>
    %89 = vector.shape_cast %88 : vector<1x8x32xf32> to vector<8x32xf32>
    %90 = vector.shape_cast %87 : vector<8x32xf32> to vector<1x8x32xf32>
    tpu.vector_store %arg9[%c0_48, %c0_49, %c0_50], %90 {strides = array<i32>} : memref<1x8x32xf32, #tpu.memory_space<vmem>>, vector<1x8x32xf32>,
    return
  }
  func.func @transform_0(%arg0: i32) -> (i32, i32, i32) {
    %c0_i32 = arith.constant 0 : i32
    %c0_i32_0 = arith.constant 0 : i32
    %c0_i32_1 = arith.constant 0 : i32
    return %arg0, %c0_i32, %c0_i32_0 : i32, i32, i32
  }
  func.func @transform_1(%arg0: i32) -> (i32, i32, i32) {
    %c0_i32 = arith.constant 0 : i32
    %c0_i32_0 = arith.constant 0 : i32
    %c0_i32_1 = arith.constant 0 : i32
    return %arg0, %c0_i32, %c0_i32_0 : i32, i32, i32
  }
  func.func @transform_2(%arg0: i32) -> (i32, i32, i32) {
    %c0_i32 = arith.constant 0 : i32
    %c0_i32_0 = arith.constant 0 : i32
    %c0_i32_1 = arith.constant 0 : i32
    return %arg0, %c0_i32, %c0_i32_0 : i32, i32, i32
  }
  func.func @transform_3(%arg0: i32) -> (i32, i32) {
    %c0_i32 = arith.constant 0 : i32
    %c0_i32_0 = arith.constant 0 : i32
    %c0_i32_1 = arith.constant 0 : i32
    return %c0_i32, %c0_i32_0 : i32, i32
  }
  func.func @transform_4(%arg0: i32) -> (i32, i32) {
    %c0_i32 = arith.constant 0 : i32
    %c0_i32_0 = arith.constant 0 : i32
    %c0_i32_1 = arith.constant 0 : i32
    return %c0_i32, %c0_i32_0 : i32, i32
  }
  func.func @transform_5(%arg0: i32) -> (i32, i32) {
    %c0_i32 = arith.constant 0 : i32
    %c0_i32_0 = arith.constant 0 : i32
    %c0_i32_1 = arith.constant 0 : i32
    return %c0_i32, %c0_i32_0 : i32, i32
  }
  func.func @transform_6(%arg0: i32) -> (i32, i32) {
    %c0_i32 = arith.constant 0 : i32
    %c0_i32_0 = arith.constant 0 : i32
    %c0_i32_1 = arith.constant 0 : i32
    return %c0_i32, %c0_i32_0 : i32, i32
  }
  func.func @transform_7(%arg0: i32) -> (i32, i32, i32, i32) {
    %c0_i32 = arith.constant 0 : i32
    %c0_i32_0 = arith.constant 0 : i32
    %c0_i32_1 = arith.constant 0 : i32
    %c0_i32_2 = arith.constant 0 : i32
    return %arg0, %c0_i32, %c0_i32_0, %c0_i32_1 : i32, i32, i32, i32
  }
  func.func @transform_8(%arg0: i32) -> (i32, i32, i32) {
    %c0_i32 = arith.constant 0 : i32
    %c0_i32_0 = arith.constant 0 : i32
    %c0_i32_1 = arith.constant 0 : i32
    return %arg0, %c0_i32, %c0_i32_0 : i32, i32, i32
  }
}

</mosaic_0001>

<llo_original>
// kernel: tpu_custom_call.1
$region0: #{tpu_custom_call.1}
  #allocation0 [shape = 'u32[]', space=smem, size = 0x4, offset = 0x4, fixed_abs, tag = 'smem constant byte address 0x4 - core index']
  #allocation1 [shape = 'u32[144,128]{1,0:T(1,128)}', space=vmem, size = 0x12000, scoped, tag = 'internal scratch']
  %s0 = inlined_call_operand.hbm [shape: f32[2,8,32], index: 0, kind: input, shape index: {}]
  %s1 = inlined_call_operand.hbm [shape: f32[2,8,32], index: 1, kind: input, shape index: {}]
  %s2 = inlined_call_operand.hbm [shape: f32[2,8,32], index: 2, kind: input, shape index: {}]
  %s3 = inlined_call_operand.hbm [shape: f32[32,32], index: 3, kind: input, shape index: {}]
  %s4 = inlined_call_operand.hbm [shape: f32[32,32], index: 4, kind: input, shape index: {}]
  %s5 = inlined_call_operand.hbm [shape: f32[32,32], index: 5, kind: input, shape index: {}]
  %s6 = inlined_call_operand.hbm [shape: f32[32,32], index: 6, kind: input, shape index: {}]
  %s7 = inlined_call_operand.hbm [shape: f32[2,4,8,8], index: 7, kind: input, shape index: {}]
  %s8 = inlined_call_operand.hbm [shape: f32[2,8,32], index: 8, kind: output, shape index: {}]
  %s9 = sld [smem:[#allocation0]]
  $region97: #{tpu_custom_call.1} parent=0
    _
  %s11 = ssub.s32 1, %s9
  %s12 = scalar_select 0, %s11, %s9
  $region1: #{tpu_custom_call.1} parent=0
    #allocation2 [shape = 'u8[8192]{0}', space=vmem, size = 0x2000, scoped, tag = 'input window, operand 0']
    #allocation3 [shape = 's32[2]{0}', space=sflag, size = 0x8, scoped, tag = 'scoped memory for tpu_custom_call.1']
    #allocation4 [shape = 's32[2]{0}', space=sflag, size = 0x8, scoped, tag = 'scoped memory for tpu_custom_call.1']
    #allocation5 [shape = 'u8[8192]{0}', space=vmem, size = 0x2000, scoped, tag = 'input window, operand 1']
    #allocation6 [shape = 's32[2]{0}', space=sflag, size = 0x8, scoped, tag = 'scoped memory for tpu_custom_call.1']
    #allocation7 [shape = 'u8[8192]{0}', space=vmem, size = 0x2000, scoped, tag = 'input window, operand 2']
    #allocation8 [shape = 'u8[16384]{0}', space=vmem, size = 0x4000, scoped, tag = 'input window, operand 3, single buffered']
    #allocation9 [shape = 's32[1]{0}', space=sflag, size = 0x4, scoped, tag = 'scoped memory for tpu_custom_call.1']
    #allocation10 [shape = 'u8[16384]{0}', space=vmem, size = 0x4000, scoped, tag = 'input window, operand 4, single buffered']
    #allocation11 [shape = 'u8[16384]{0}', space=vmem, size = 0x4000, scoped, tag = 'input window, operand 5, single buffered']
    #allocation12 [shape = 's32[1]{0}', space=sflag, size = 0x4, scoped, tag = 'scoped memory for tpu_custom_call.1']
    #allocation13 [shape = 'u8[16384]{0}', space=vmem, size = 0x4000, scoped, tag = 'input window, operand 6, single buffered']
    #allocation14 [shape = 'u8[32768]{0}', space=vmem, size = 0x8000, scoped, tag = 'input window, operand 7']
    #allocation15 [shape = 's32[2]{0}', space=sflag, size = 0x8, scoped, tag = 'scoped memory for tpu_custom_call.1']
    #allocation16 [shape = 'u8[8192]{0}', space=vmem, size = 0x2000, scoped, tag = 'output window, operand 0']
    %13 = vsyncpa [#allocation3], 0
    %s14 = scalar_lea.sflag [#allocation3], 1
    %15 = vsyncpa %s14, 0
    %16 = vsyncpa [#allocation6], 0
    %s17 = scalar_lea.sflag [#allocation6], 1
    %18 = vsyncpa %s17, 0
    %19 = vsyncpa [#allocation9], 0
    %20 = vsyncpa [#allocation12], 0
    %21 = vsyncpa [#allocation15], 0
    %s22 = scalar_lea.sflag [#allocation15], 1
    %23 = vsyncpa %s22, 0
    %24 = vsyncpa [#allocation4], 0
    %s25 = scalar_lea.sflag [#allocation4], 1
    %26 = vsyncpa %s25, 0
    loop: start=0, step=1, limit=4
    $region2: #{tpu_custom_call.1} parent=1 // loop_pre_header
      _
    $region3: #{tpu_custom_call.1} parent=1 // loop_header
      %s28 = sphi 0, %s32
      %p29 = scmp.ge.s32.totalorder %s28, 4
      %s38 = sphi 0, %s40
      %s41 = sphi 0, %s38
      %s42 = sphi 0, %s41
      %s58 = sphi 0, %s42
      %s64 = sphi 0, %s66
      %s67 = sphi 0, %s64
      %s68 = sphi 0, %s67
      %s84 = sphi 0, %s68
      %s90 = sphi 0, %s92
      %s93 = sphi 0, %s90
      %s94 = sphi 0, %s93
      %s110 = sphi 0, %s94
      %s114 = sphi 0, %s114
      %s116 = sphi 0, %s114
      %s117 = sphi 0, %s116
      %s131 = sphi 0, %s117
      %s135 = sphi 0, %s135
      %s137 = sphi 0, %s135
      %s138 = sphi 0, %s137
      %s152 = sphi 0, %s138
      %s156 = sphi 0, %s156
      %s158 = sphi 0, %s156
      %s159 = sphi 0, %s158
      %s173 = sphi 0, %s159
      %s177 = sphi 0, %s177
      %s179 = sphi 0, %s177
      %s180 = sphi 0, %s179
      %s194 = sphi 0, %s180
      %s200 = sphi 0, %s202
      %s203 = sphi 0, %s200
      %s204 = sphi 0, %s203
      %s220 = sphi 0, %s204
      %s226 = sphi 0, %s228
      %s229 = sphi 0, %s226
      %s230 = sphi 0, %s229
      %s246 = sphi 0, %s230
    $region4: #{tpu_custom_call.1} parent=1 // loop_header_branch
      %31 = sbr.rel (%p29) target = $region8
    $region5: #{tpu_custom_call.1} parent=1 // loop_body
      %s33 = ssub.s32 %s28, 1
      %s34 = ssub.s32 %s28, 2
      %s35 = sadd.s32 %s28, 1
      %s36 = ssub.s32 %s28, %s35
      %p37 = scmp.eq.s32.totalorder %s36, 0
      %s39 = sadd.s32 %s38, 1
      %s40 = scalar_select %p37, %s38, %s39
      %p43 = pneg %p37
      %p44 = scmp.eq.s32.totalorder %s28, 1
      %p45 = por %p43, %p44
      %p46 = scmp.ne.s32.totalorder %s38, %s41
      %p47 = scmp.eq.s32.totalorder %s28, 0
      %p48 = por %p46, %p47
      %p49 = scmp.ne.s32.totalorder %s38, %s41
      %p50 = scmp.eq.s32.totalorder %s33, 1
      %p51 = por %p49, %p50
      %p52 = scmp.ne.s32.totalorder %s41, %s42
      %p53 = scmp.eq.s32.totalorder %s33, 0
      %p54 = por %p52, %p53
      %p55 = scmp.ne.s32.totalorder %s41, %s42
      %p56 = scmp.eq.s32.totalorder %s34, 1
      %p57 = por %p55, %p56
      %p59 = scmp.ne.s32.totalorder %s42, %s58
      %p60 = scmp.eq.s32.totalorder %s34, 0
      %p61 = por %p59, %p60
      %s62 = ssub.s32 %s28, %s35
      %p63 = scmp.eq.s32.totalorder %s62, 0
      %s65 = sadd.s32 %s64, 1
      %s66 = scalar_select %p63, %s64, %s65
      %p69 = pneg %p63
      %p70 = scmp.eq.s32.totalorder %s28, 1
      %p71 = por %p69, %p70
      %p72 = scmp.ne.s32.totalorder %s64, %s67
      %p73 = scmp.eq.s32.totalorder %s28, 0
      %p74 = por %p72, %p73
      %p75 = scmp.ne.s32.totalorder %s64, %s67
      %p76 = scmp.eq.s32.totalorder %s33, 1
      %p77 = por %p75, %p76
      %p78 = scmp.ne.s32.totalorder %s67, %s68
      %p79 = scmp.eq.s32.totalorder %s33, 0
      %p80 = por %p78, %p79
      %p81 = scmp.ne.s32.totalorder %s67, %s68
      %p82 = scmp.eq.s32.totalorder %s34, 1
      %p83 = por %p81, %p82
      %p85 = scmp.ne.s32.totalorder %s68, %s84
      %p86 = scmp.eq.s32.totalorder %s34, 0
      %p87 = por %p85, %p86
      %s88 = ssub.s32 %s28, %s35
      %p89 = scmp.eq.s32.totalorder %s88, 0
      %s91 = sadd.s32 %s90, 1
      %s92 = scalar_select %p89, %s90, %s91
      %p95 = pneg %p89
      %p96 = scmp.eq.s32.totalorder %s28, 1
      %p97 = por %p95, %p96
      %p98 = scmp.ne.s32.totalorder %s90, %s93
      %p99 = scmp.eq.s32.totalorder %s28, 0
      %p100 = por %p98, %p99
      %p101 = scmp.ne.s32.totalorder %s90, %s93
      %p102 = scmp.eq.s32.totalorder %s33, 1
      %p103 = por %p101, %p102
      %p104 = scmp.ne.s32.totalorder %s93, %s94
      %p105 = scmp.eq.s32.totalorder %s33, 0
      %p106 = por %p104, %p105
      %p107 = scmp.ne.s32.totalorder %s93, %s94
      %p108 = scmp.eq.s32.totalorder %s34, 1
      %p109 = por %p107, %p108
      %p111 = scmp.ne.s32.totalorder %s94, %s110
      %p112 = scmp.eq.s32.totalorder %s34, 0
      %p113 = por %p111, %p112
      %s115 = sadd.s32 %s114, 1
      %p118 = scmp.eq.s32.totalorder %s28, 1
      %p119 = scmp.ne.s32.totalorder %s114, %s116
      %p120 = scmp.eq.s32.totalorder %s28, 0
      %p121 = por %p119, %p120
      %p122 = scmp.ne.s32.totalorder %s114, %s116
      %p123 = scmp.eq.s32.totalorder %s33, 1
      %p124 = por %p122, %p123
      %p125 = scmp.ne.s32.totalorder %s116, %s117
      %p126 = scmp.eq.s32.totalorder %s33, 0
      %p127 = por %p125, %p126
      %p128 = scmp.ne.s32.totalorder %s116, %s117
      %p129 = scmp.eq.s32.totalorder %s34, 1
      %p130 = por %p128, %p129
      %p132 = scmp.ne.s32.totalorder %s117, %s131
      %p133 = scmp.eq.s32.totalorder %s34, 0
      %p134 = por %p132, %p133
      %s136 = sadd.s32 %s135, 1
      %p139 = scmp.eq.s32.totalorder %s28, 1
      %p140 = scmp.ne.s32.totalorder %s135, %s137
      %p141 = scmp.eq.s32.totalorder %s28, 0
      %p142 = por %p140, %p141
      %p143 = scmp.ne.s32.totalorder %s135, %s137
      %p144 = scmp.eq.s32.totalorder %s33, 1
      %p145 = por %p143, %p144
      %p146 = scmp.ne.s32.totalorder %s137, %s138
      %p147 = scmp.eq.s32.totalorder %s33, 0
      %p148 = por %p146, %p147
      %p149 = scmp.ne.s32.totalorder %s137, %s138
      %p150 = scmp.eq.s32.totalorder %s34, 1
      %p151 = por %p149, %p150
      %p153 = scmp.ne.s32.totalorder %s138, %s152
      %p154 = scmp.eq.s32.totalorder %s34, 0
      %p155 = por %p153, %p154
      %s157 = sadd.s32 %s156, 1
      %p160 = scmp.eq.s32.totalorder %s28, 1
      %p161 = scmp.ne.s32.totalorder %s156, %s158
      %p162 = scmp.eq.s32.totalorder %s28, 0
      %p163 = por %p161, %p162
      %p164 = scmp.ne.s32.totalorder %s156, %s158
      %p165 = scmp.eq.s32.totalorder %s33, 1
      %p166 = por %p164, %p165
      %p167 = scmp.ne.s32.totalorder %s158, %s159
      %p168 = scmp.eq.s32.totalorder %s33, 0
      %p169 = por %p167, %p168
      %p170 = scmp.ne.s32.totalorder %s158, %s159
      %p171 = scmp.eq.s32.totalorder %s34, 1
      %p172 = por %p170, %p171
      %p174 = scmp.ne.s32.totalorder %s159, %s173
      %p175 = scmp.eq.s32.totalorder %s34, 0
      %p176 = por %p174, %p175
      %s178 = sadd.s32 %s177, 1
      %p181 = scmp.eq.s32.totalorder %s28, 1
      %p182 = scmp.ne.s32.totalorder %s177, %s179
      %p183 = scmp.eq.s32.totalorder %s28, 0
      %p184 = por %p182, %p183
      %p185 = scmp.ne.s32.totalorder %s177, %s179
      %p186 = scmp.eq.s32.totalorder %s33, 1
      %p187 = por %p185, %p186
      %p188 = scmp.ne.s32.totalorder %s179, %s180
      %p189 = scmp.eq.s32.totalorder %s33, 0
      %p190 = por %p188, %p189
      %p191 = scmp.ne.s32.totalorder %s179, %s180
      %p192 = scmp.eq.s32.totalorder %s34, 1
      %p193 = por %p191, %p192
      %p195 = scmp.ne.s32.totalorder %s180, %s194
      %p196 = scmp.eq.s32.totalorder %s34, 0
      %p197 = por %p195, %p196
      %s198 = ssub.s32 %s28, %s35
      %p199 = scmp.eq.s32.totalorder %s198, 0
      %s201 = sadd.s32 %s200, 1
      %s202 = scalar_select %p199, %s200, %s201
      %p205 = pneg %p199
      %p206 = scmp.eq.s32.totalorder %s28, 1
      %p207 = por %p205, %p206
      %p208 = scmp.ne.s32.totalorder %s200, %s203
      %p209 = scmp.eq.s32.totalorder %s28, 0
      %p210 = por %p208, %p209
      %p211 = scmp.ne.s32.totalorder %s200, %s203
      %p212 = scmp.eq.s32.totalorder %s33, 1
      %p213 = por %p211, %p212
      %p214 = scmp.ne.s32.totalorder %s203, %s204
      %p215 = scmp.eq.s32.totalorder %s33, 0
      %p216 = por %p214, %p215
      %p217 = scmp.ne.s32.totalorder %s203, %s204
      %p218 = scmp.eq.s32.totalorder %s34, 1
      %p219 = por %p217, %p218
      %p221 = scmp.ne.s32.totalorder %s204, %s220
      %p222 = scmp.eq.s32.totalorder %s34, 0
      %p223 = por %p221, %p222
      %s224 = ssub.s32 %s28, %s35
      %p225 = scmp.eq.s32.totalorder %s224, 0
      %s227 = sadd.s32 %s226, 1
      %s228 = scalar_select %p225, %s226, %s227
      %p231 = pneg %p225
      %p232 = scmp.eq.s32.totalorder %s28, 1
      %p233 = por %p231, %p232
      %p234 = scmp.ne.s32.totalorder %s226, %s229
      %p235 = scmp.eq.s32.totalorder %s28, 0
      %p236 = por %p234, %p235
      %p237 = scmp.ne.s32.totalorder %s226, %s229
      %p238 = scmp.eq.s32.totalorder %s33, 1
      %p239 = por %p237, %p238
      %p240 = scmp.ne.s32.totalorder %s229, %s230
      %p241 = scmp.eq.s32.totalorder %s33, 0
      %p242 = por %p240, %p241
      %p243 = scmp.ne.s32.totalorder %s229, %s230
      %p244 = scmp.eq.s32.totalorder %s34, 1
      %p245 = por %p243, %p244
      %p247 = scmp.ne.s32.totalorder %s230, %s246
      %p248 = scmp.eq.s32.totalorder %s34, 0
      %p249 = por %p247, %p248
      %p250 = scmp.le.s32.totalorder 1, %s28
      %p251 = scmp.lt.s32.totalorder %s28, 3
      %p252 = pnand %p250, %p251
      %p253 = pneg %p252
      // Predicated region
      $region9: #{tpu_custom_call.1} parent=5 // pred_check
        _
      $region10: #{tpu_custom_call.1} parent=5 // pred_check_branch
        %255 = sbr.rel (%p252) target = $region12
      $region11: #{tpu_custom_call.1} parent=5 // pred_region
        %s256 = ssub.s32 %s28, 1
        // Predicated region
        $region13: #{tpu_custom_call.1} parent=11 // pred_check
          %p257 = pneg %p127
        $region14: #{tpu_custom_call.1} parent=11 // pred_check_branch
          %259 = sbr.rel (%p257) target = $region16
        $region15: #{tpu_custom_call.1} parent=11 // pred_region
          %s261 = ssub.s32 512, 512
          %262 = vsyncadd [#allocation9], %s261
          %s263 = sshll.u32 [#allocation8], 4
          %s264 = int_to_ptr.vmem [resolvable:$true] %s263
          %269 = dma.hbm_to_vmem [thread:$0]  %s3, 512, %s264, [#allocation9], 128, 128, 8
        $region16: #{tpu_custom_call.1} parent=11 // pred_fallthru
          _
        // Predicated region
        $region17: #{tpu_custom_call.1} parent=11 // pred_check
          %p270 = pneg %p148
        $region18: #{tpu_custom_call.1} parent=11 // pred_check_branch
          %272 = sbr.rel (%p270) target = $region20
        $region19: #{tpu_custom_call.1} parent=11 // pred_region
          %s274 = ssub.s32 512, 512
          %275 = vsyncadd [#allocation9], %s274
          %s276 = sshll.u32 [#allocation10], 4
          %s277 = int_to_ptr.vmem [resolvable:$true] %s276
          %282 = dma.hbm_to_vmem [thread:$0]  %s4, 512, %s277, [#allocation9], 128, 128, 8
        $region20: #{tpu_custom_call.1} parent=11 // pred_fallthru
          _
        // Predicated region
        $region21: #{tpu_custom_call.1} parent=11 // pred_check
          %p283 = pneg %p169
        $region22: #{tpu_custom_call.1} parent=11 // pred_check_branch
          %285 = sbr.rel (%p283) target = $region24
        $region23: #{tpu_custom_call.1} parent=11 // pred_region
          %s287 = ssub.s32 512, 512
          %288 = vsyncadd [#allocation12], %s287
          %s289 = sshll.u32 [#allocation11], 4
          %s290 = int_to_ptr.vmem [resolvable:$true] %s289
          %295 = dma.hbm_to_vmem [thread:$0]  %s5, 512, %s290, [#allocation12], 128, 128, 8
        $region24: #{tpu_custom_call.1} parent=11 // pred_fallthru
          _
        // Predicated region
        $region25: #{tpu_custom_call.1} parent=11 // pred_check
          %p296 = pneg %p190
        $region26: #{tpu_custom_call.1} parent=11 // pred_check_branch
          %298 = sbr.rel (%p296) target = $region28
        $region27: #{tpu_custom_call.1} parent=11 // pred_region
          %s300 = ssub.s32 512, 512
          %301 = vsyncadd [#allocation12], %s300
          %s302 = sshll.u32 [#allocation13], 4
          %s303 = int_to_ptr.vmem [resolvable:$true] %s302
          %308 = dma.hbm_to_vmem [thread:$0]  %s6, 512, %s303, [#allocation12], 128, 128, 8
        $region28: #{tpu_custom_call.1} parent=11 // pred_fallthru
          _
      $region12: #{tpu_custom_call.1} parent=5 // pred_fallthru
        _
      %p309 = scmp.lt.s32.totalorder %s28, 2
      // Predicated region
      $region29: #{tpu_custom_call.1} parent=5 // pred_check
        %p310 = pneg %p309
      $region30: #{tpu_custom_call.1} parent=5 // pred_check_branch
        %312 = sbr.rel (%p310) target = $region32
      $region31: #{tpu_custom_call.1} parent=5 // pred_region
        // Predicated region
        $region33: #{tpu_custom_call.1} parent=31 // pred_check
          %p313 = pneg %p48
        $region34: #{tpu_custom_call.1} parent=31 // pred_check_branch
          %315 = sbr.rel (%p313) target = $region36
        $region35: #{tpu_custom_call.1} parent=31 // pred_region
          %s316 = sand.u32 %s38, 1
          %s317 = scalar_lea.sflag [#allocation3], %s316
          %s318 = sand.u32 %s38, 1
          %s319 = smul.addr %s318, 8
          %s320 = scalar_lea.vmem [#allocation2], %s319
          %s322 = ssub.s32 128, 128
          %323 = vsyncadd %s317, %s322
          %s324 = smul.addr %s28, 128
          %s325 = scalar_lea.hbm %s0, %s324
          %s327 = sshll.u32 %s320, 4
          %s328 = int_to_ptr.vmem [resolvable:$true] %s327
          %330 = dma.hbm_to_vmem [thread:$0]  %s325, 128, %s328, %s317
        $region36: #{tpu_custom_call.1} parent=31 // pred_fallthru
          _
        // Predicated region
        $region37: #{tpu_custom_call.1} parent=31 // pred_check
          %p331 = pneg %p74
        $region38: #{tpu_custom_call.1} parent=31 // pred_check_branch
          %333 = sbr.rel (%p331) target = $region40
        $region39: #{tpu_custom_call.1} parent=31 // pred_region
          %s334 = sand.u32 %s28, 1
          %s335 = scalar_lea.sflag [#allocation6], %s334
          %s336 = sand.u32 %s64, 1
          %s337 = smul.addr %s336, 8
          %s338 = scalar_lea.vmem [#allocation5], %s337
          %s340 = ssub.s32 128, 128
          %341 = vsyncadd %s335, %s340
          %s342 = smul.addr %s28, 128
          %s343 = scalar_lea.hbm %s1, %s342
          %s345 = sshll.u32 %s338, 4
          %s346 = int_to_ptr.vmem [resolvable:$true] %s345
          %348 = dma.hbm_to_vmem [thread:$0]  %s343, 128, %s346, %s335
        $region40: #{tpu_custom_call.1} parent=31 // pred_fallthru
          _
        // Predicated region
        $region41: #{tpu_custom_call.1} parent=31 // pred_check
          %p349 = pneg %p100
        $region42: #{tpu_custom_call.1} parent=31 // pred_check_branch
          %351 = sbr.rel (%p349) target = $region44
        $region43: #{tpu_custom_call.1} parent=31 // pred_region
          %s352 = sand.u32 %s28, 1
          %s353 = scalar_lea.sflag [#allocation6], %s352
          %s354 = sand.u32 %s90, 1
          %s355 = smul.addr %s354, 8
          %s356 = scalar_lea.vmem [#allocation7], %s355
          %s358 = ssub.s32 128, 128
          %359 = vsyncadd %s353, %s358
          %s360 = smul.addr %s28, 128
          %s361 = scalar_lea.hbm %s2, %s360
          %s363 = sshll.u32 %s356, 4
          %s364 = int_to_ptr.vmem [resolvable:$true] %s363
          %366 = dma.hbm_to_vmem [thread:$0]  %s361, 128, %s364, %s353
        $region44: #{tpu_custom_call.1} parent=31 // pred_fallthru
          _
        // Predicated region
        $region45: #{tpu_custom_call.1} parent=31 // pred_check
          %p367 = pneg %p210
        $region46: #{tpu_custom_call.1} parent=31 // pred_check_branch
          %369 = sbr.rel (%p367) target = $region48
        $region47: #{tpu_custom_call.1} parent=31 // pred_region
          %s370 = sand.u32 %s200, 1
          %s371 = scalar_lea.sflag [#allocation15], %s370
          %s372 = sand.u32 %s200, 1
          %s373 = smul.addr %s372, 32
          %s374 = scalar_lea.vmem [#allocation14], %s373
          %s376 = ssub.s32 512, 512
          %377 = vsyncadd %s371, %s376
          %s378 = smul.addr %s28, 4
          %s379 = smul.addr %s378, 128
          %s380 = scalar_lea.hbm %s7, %s379
          %s381 = sshll.u32 %s374, 4
          %s382 = int_to_ptr.vmem [resolvable:$true] %s381
          %387 = dma.hbm_to_vmem [thread:$0]  %s380, 512, %s382, %s371, 128, 128, 8
        $region48: #{tpu_custom_call.1} parent=31 // pred_fallthru
          _
      $region32: #{tpu_custom_call.1} parent=5 // pred_fallthru
        _
      %p388 = scmp.le.s32.totalorder 1, %s28
      %p389 = scmp.lt.s32.totalorder %s28, 3
      %p390 = pnand %p388, %p389
      %p391 = pneg %p390
      // Predicated region
      $region49: #{tpu_custom_call.1} parent=5 // pred_check
        _
      $region50: #{tpu_custom_call.1} parent=5 // pred_check_branch
        %393 = sbr.rel (%p390) target = $region52
      $region51: #{tpu_custom_call.1} parent=5 // pred_region
        %s394 = ssub.s32 %s28, 1
        %s395 = sand.u32 %s41, 1
        %s396 = scalar_lea.sflag [#allocation3], %s395
        %s397 = sand.u32 %s41, 1
        %s398 = smul.addr %s397, 8
        %s399 = scalar_lea.vmem [#allocation2], %s398
        // Predicated region
        $region53: #{tpu_custom_call.1} parent=51 // pred_check
          %p400 = pneg %p54
        $region54: #{tpu_custom_call.1} parent=51 // pred_check_branch
          %402 = sbr.rel (%p400) target = $region56
        $region55: #{tpu_custom_call.1} parent=51 // pred_region
          %403 = dma.done %s396, 128
        $region56: #{tpu_custom_call.1} parent=51 // pred_fallthru
          _
        %s404 = sand.u32 %s33, 1
        %s405 = scalar_lea.sflag [#allocation6], %s404
        %s406 = sand.u32 %s67, 1
        %s407 = smul.addr %s406, 8
        %s408 = scalar_lea.vmem [#allocation5], %s407
        // Predicated region
        $region57: #{tpu_custom_call.1} parent=51 // pred_check
          %p409 = pneg %p80
        $region58: #{tpu_custom_call.1} parent=51 // pred_check_branch
          %411 = sbr.rel (%p409) target = $region60
        $region59: #{tpu_custom_call.1} parent=51 // pred_region
          %412 = dma.done %s405, 128
        $region60: #{tpu_custom_call.1} parent=51 // pred_fallthru
          _
        %s413 = sand.u32 %s33, 1
        %s414 = scalar_lea.sflag [#allocation6], %s413
        %s415 = sand.u32 %s93, 1
        %s416 = smul.addr %s415, 8
        %s417 = scalar_lea.vmem [#allocation7], %s416
        // Predicated region
        $region61: #{tpu_custom_call.1} parent=51 // pred_check
          %p418 = pneg %p106
        $region62: #{tpu_custom_call.1} parent=51 // pred_check_branch
          %420 = sbr.rel (%p418) target = $region64
        $region63: #{tpu_custom_call.1} parent=51 // pred_region
          %421 = dma.done %s414, 128
        $region64: #{tpu_custom_call.1} parent=51 // pred_fallthru
          _
        // Predicated region
        $region65: #{tpu_custom_call.1} parent=51 // pred_check
          %p422 = pneg %p127
        $region66: #{tpu_custom_call.1} parent=51 // pred_check_branch
          %424 = sbr.rel (%p422) target = $region68
        $region67: #{tpu_custom_call.1} parent=51 // pred_region
          %425 = dma.done [#allocation9], 512
        $region68: #{tpu_custom_call.1} parent=51 // pred_fallthru
          _
        // Predicated region
        $region69: #{tpu_custom_call.1} parent=51 // pred_check
          %p426 = pneg %p148
        $region70: #{tpu_custom_call.1} parent=51 // pred_check_branch
          %428 = sbr.rel (%p426) target = $region72
        $region71: #{tpu_custom_call.1} parent=51 // pred_region
          %429 = dma.done [#allocation9], 512
        $region72: #{tpu_custom_call.1} parent=51 // pred_fallthru
          _
        // Predicated region
        $region73: #{tpu_custom_call.1} parent=51 // pred_check
          %p430 = pneg %p169
        $region74: #{tpu_custom_call.1} parent=51 // pred_check_branch
          %432 = sbr.rel (%p430) target = $region76
        $region75: #{tpu_custom_call.1} parent=51 // pred_region
          %433 = dma.done [#allocation12], 512
        $region76: #{tpu_custom_call.1} parent=51 // pred_fallthru
          _
        // Predicated region
        $region77: #{tpu_custom_call.1} parent=51 // pred_check
          %p434 = pneg %p190
        $region78: #{tpu_custom_call.1} parent=51 // pred_check_branch
          %436 = sbr.rel (%p434) target = $region80
        $region79: #{tpu_custom_call.1} parent=51 // pred_region
          %437 = dma.done [#allocation12], 512
        $region80: #{tpu_custom_call.1} parent=51 // pred_fallthru
          _
        %s438 = sand.u32 %s203, 1
        %s439 = scalar_lea.sflag [#allocation15], %s438
        %s440 = sand.u32 %s203, 1
        %s441 = smul.addr %s440, 32
        %s442 = scalar_lea.vmem [#allocation14], %s441
        // Predicated region
        $region81: #{tpu_custom_call.1} parent=51 // pred_check
          %p443 = pneg %p216
        $region82: #{tpu_custom_call.1} parent=51 // pred_check_branch
          %445 = sbr.rel (%p443) target = $region84
        $region83: #{tpu_custom_call.1} parent=51 // pred_region
          %446 = dma.done %s439, 512
        $region84: #{tpu_custom_call.1} parent=51 // pred_fallthru
          _
        %s447 = sand.u32 %s41, 1
        %s448 = scalar_lea.sflag [#allocation3], %s447
        %s449 = sand.u32 %s41, 1
        %s450 = smul.addr %s449, 8
        %s451 = scalar_lea.vmem [#allocation2], %s450
        %p452 = pneg %p54
        %p453 = pneg %p51
        %s454 = sand.u32 %s33, 1
        %s455 = scalar_lea.sflag [#allocation6], %s454
        %s456 = sand.u32 %s67, 1
        %s457 = smul.addr %s456, 8
        %s458 = scalar_lea.vmem [#allocation5], %s457
        %p459 = pneg %p80
        %p460 = pneg %p77
        %s461 = sand.u32 %s33, 1
        %s462 = scalar_lea.sflag [#allocation6], %s461
        %s463 = sand.u32 %s93, 1
        %s464 = smul.addr %s463, 8
        %s465 = scalar_lea.vmem [#allocation7], %s464
        %p466 = pneg %p106
        %p467 = pneg %p103
        %p468 = pneg %p127
        %p469 = pneg %p124
        %p470 = pneg %p148
        %p471 = pneg %p145
        %p472 = pneg %p169
        %p473 = pneg %p166
        %p474 = pneg %p190
        %p475 = pneg %p187
        %s476 = sand.u32 %s203, 1
        %s477 = scalar_lea.sflag [#allocation15], %s476
        %s478 = sand.u32 %s203, 1
        %s479 = smul.addr %s478, 32
        %s480 = scalar_lea.vmem [#allocation14], %s479
        %p481 = pneg %p216
        %p482 = pneg %p213
        %p483 = pneg %p242
        %p484 = pneg %p239
        %s485 = sand.u32 %s229, 1
        %s486 = scalar_lea.sflag [#allocation4], %s485
        %s487 = sand.u32 %s229, 1
        %s488 = smul.addr %s487, 8
        %s489 = scalar_lea.vmem [#allocation16], %s488
        %v490 = vld [vmem:[%s399] sm:$0xff]
        %v491 = vld [vmem:[%s408] sm:$0xff]
        %v492 = vld [vmem:[%s417] sm:$0xff]
        %v493 = vld [vmem:[#allocation8] sm:$0xff]
        %v494 = vld [vmem:[#allocation8 + $0x8] sm:$0xff]
        %v495 = vld [vmem:[#allocation8 + $0x10] sm:$0xff]
        %v496 = vld [vmem:[#allocation8 + $0x18] sm:$0xff]
        %vm497 = vcmask 261120
        %v499 = vsel %vm497, %v490, 0
        %501 = vmatprep.subr.mxu0 0.0
        %502 = vmatpush1.msra.mxu0 0.0
        %503 = vmatprep.subr.mxu0 0.0
        %504 = vmatpush1.msra.mxu0 0.0
        %505 = vmatprep.subr.mxu0 0.0
        %506 = vmatpush1.msra.mxu0 0.0
        %507 = vmatprep.subr.mxu0 0.0
        %508 = vmatpush1.msra.mxu0 0.0
        %509 = vmatprep.subr.mxu0 0.0
        %510 = vmatpush1.msra.mxu0 0.0
        %511 = vmatprep.subr.mxu0 0.0
        %512 = vmatpush1.msra.mxu0 0.0
        %513 = vmatprep.subr.mxu0 0.0
        %514 = vmatpush1.msra.mxu0 0.0
        %515 = vmatprep.subr.mxu0 0.0
        %516 = vmatpush1.msra.mxu0 0.0
        %517 = vmatprep.subr.mxu0 0.0
        %518 = vmatpush1.msra.mxu0 0.0
        %519 = vmatprep.subr.mxu0 0.0
        %520 = vmatpush1.msra.mxu0 0.0
        %521 = vmatprep.subr.mxu0 0.0
        %522 = vmatpush1.msra.mxu0 0.0
        %523 = vmatprep.subr.mxu0 0.0
        %524 = vmatpush1.msra.mxu0 0.0
        %525 = vmatprep.subr.mxu0 0.0
        %526 = vmatpush1.msra.mxu0 %v496
        %527 = vmatprep.subr.mxu0 0.0
        %528 = vmatpush1.msra.mxu0 %v495
        %529 = vmatprep.subr.mxu0 0.0
        %530 = vmatpush1.msra.mxu0 %v494
        %531 = vmatprep.subr.mxu0 0.0
        %532 = vmatpush1.msra.mxu0 %v493
        %533 = vmatprep.subr.mxu0 0.0
        %534 = vmatpush2.msra.mxu0 0.0
        %535 = vmatprep.subr.mxu0 0.0
        %536 = vmatpush2.msra.mxu0 0.0
        %537 = vmatprep.subr.mxu0 0.0
        %538 = vmatpush2.msra.mxu0 0.0
        %539 = vmatprep.subr.mxu0 0.0
        %540 = vmatpush2.msra.mxu0 0.0
        %541 = vmatprep.subr.mxu0 0.0
        %542 = vmatpush2.msra.mxu0 0.0
        %543 = vmatprep.subr.mxu0 0.0
        %544 = vmatpush2.msra.mxu0 0.0
        %545 = vmatprep.subr.mxu0 0.0
        %546 = vmatpush2.msra.mxu0 0.0
        %547 = vmatprep.subr.mxu0 0.0
        %548 = vmatpush2.msra.mxu0 0.0
        %549 = vmatprep.subr.mxu0 0.0
        %550 = vmatpush2.msra.mxu0 0.0
        %551 = vmatprep.subr.mxu0 0.0
        %552 = vmatpush2.msra.mxu0 0.0
        %553 = vmatprep.subr.mxu0 0.0
        %554 = vmatpush2.msra.mxu0 0.0
        %555 = vmatprep.subr.mxu0 0.0
        %556 = vmatpush2.msra.mxu0 0.0
        %557 = vmatprep.subr.mxu0 0.0
        %558 = vmatpush2.msra.mxu0 0.0
        %559 = vmatprep.subr.mxu0 0.0
        %560 = vmatpush2.msra.mxu0 0.0
        %561 = vmatprep.subr.mxu0 0.0
        %562 = vmatpush2.msra.mxu0 0.0
        %563 = vmatprep.subr.mxu0 0.0
        %564 = vmatpush2.msra.mxu0 0.0
        %565 = vmatprep.mubr.f32.mxu0 0.0
        %566 = vmatmul.mubr.f32.gmra.mxu0 %v499
        %v567 = vpop.f32.mrf.mxu0
        %v568 = vadd.f32 0.0, %v567
        %v569 = vpop.f32.mrf.mxu0
        %570 = vdwg.mxu0
        %v571 = vld [vmem:[#allocation10] sm:$0xff]
        %v572 = vld [vmem:[#allocation10 + $0x8] sm:$0xff]
        %v573 = vld [vmem:[#allocation10 + $0x10] sm:$0xff]
        %v574 = vld [vmem:[#allocation10 + $0x18] sm:$0xff]
        %v576 = vsel %vm497, %v491, 0
        %578 = vmatprep.subr.mxu0 0.0
        %579 = vmatpush1.msra.mxu0 0.0
        %580 = vmatprep.subr.mxu0 0.0
        %581 = vmatpush1.msra.mxu0 0.0
        %582 = vmatprep.subr.mxu0 0.0
        %583 = vmatpush1.msra.mxu0 0.0
        %584 = vmatprep.subr.mxu0 0.0
        %585 = vmatpush1.msra.mxu0 0.0
        %586 = vmatprep.subr.mxu0 0.0
        %587 = vmatpush1.msra.mxu0 0.0
        %588 = vmatprep.subr.mxu0 0.0
        %589 = vmatpush1.msra.mxu0 0.0
        %590 = vmatprep.subr.mxu0 0.0
        %591 = vmatpush1.msra.mxu0 0.0
        %592 = vmatprep.subr.mxu0 0.0
        %593 = vmatpush1.msra.mxu0 0.0
        %594 = vmatprep.subr.mxu0 0.0
        %595 = vmatpush1.msra.mxu0 0.0
        %596 = vmatprep.subr.mxu0 0.0
        %597 = vmatpush1.msra.mxu0 0.0
        %598 = vmatprep.subr.mxu0 0.0
        %599 = vmatpush1.msra.mxu0 0.0
        %600 = vmatprep.subr.mxu0 0.0
        %601 = vmatpush1.msra.mxu0 0.0
        %602 = vmatprep.subr.mxu0 0.0
        %603 = vmatpush1.msra.mxu0 %v574
        %604 = vmatprep.subr.mxu0 0.0
        %605 = vmatpush1.msra.mxu0 %v573
        %606 = vmatprep.subr.mxu0 0.0
        %607 = vmatpush1.msra.mxu0 %v572
        %608 = vmatprep.subr.mxu0 0.0
        %609 = vmatpush1.msra.mxu0 %v571
        %610 = vmatprep.subr.mxu0 0.0
        %611 = vmatpush2.msra.mxu0 0.0
        %612 = vmatprep.subr.mxu0 0.0
        %613 = vmatpush2.msra.mxu0 0.0
        %614 = vmatprep.subr.mxu0 0.0
        %615 = vmatpush2.msra.mxu0 0.0
        %616 = vmatprep.subr.mxu0 0.0
        %617 = vmatpush2.msra.mxu0 0.0
        %618 = vmatprep.subr.mxu0 0.0
        %619 = vmatpush2.msra.mxu0 0.0
        %620 = vmatprep.subr.mxu0 0.0
        %621 = vmatpush2.msra.mxu0 0.0
        %622 = vmatprep.subr.mxu0 0.0
        %623 = vmatpush2.msra.mxu0 0.0
        %624 = vmatprep.subr.mxu0 0.0
        %625 = vmatpush2.msra.mxu0 0.0
        %626 = vmatprep.subr.mxu0 0.0
        %627 = vmatpush2.msra.mxu0 0.0
        %628 = vmatprep.subr.mxu0 0.0
        %629 = vmatpush2.msra.mxu0 0.0
        %630 = vmatprep.subr.mxu0 0.0
        %631 = vmatpush2.msra.mxu0 0.0
        %632 = vmatprep.subr.mxu0 0.0
        %633 = vmatpush2.msra.mxu0 0.0
        %634 = vmatprep.subr.mxu0 0.0
        %635 = vmatpush2.msra.mxu0 0.0
        %636 = vmatprep.subr.mxu0 0.0
        %637 = vmatpush2.msra.mxu0 0.0
        %638 = vmatprep.subr.mxu0 0.0
        %639 = vmatpush2.msra.mxu0 0.0
        %640 = vmatprep.subr.mxu0 0.0
        %641 = vmatpush2.msra.mxu0 0.0
        %642 = vmatprep.mubr.f32.mxu0 0.0
        %643 = vmatmul.mubr.f32.gmra.mxu0 %v576
        %v644 = vpop.f32.mrf.mxu0
        %v645 = vadd.f32 0.0, %v644
        %v646 = vpop.f32.mrf.mxu0
        %647 = vdwg.mxu0
        %v648 = vld [vmem:[#allocation11] sm:$0xff]
        %v649 = vld [vmem:[#allocation11 + $0x8] sm:$0xff]
        %v650 = vld [vmem:[#allocation11 + $0x10] sm:$0xff]
        %v651 = vld [vmem:[#allocation11 + $0x18] sm:$0xff]
        %v653 = vsel %vm497, %v492, 0
        %655 = vmatprep.subr.mxu0 0.0
        %656 = vmatpush1.msra.mxu0 0.0
        %657 = vmatprep.subr.mxu0 0.0
        %658 = vmatpush1.msra.mxu0 0.0
        %659 = vmatprep.subr.mxu0 0.0
        %660 = vmatpush1.msra.mxu0 0.0
        %661 = vmatprep.subr.mxu0 0.0
        %662 = vmatpush1.msra.mxu0 0.0
        %663 = vmatprep.subr.mxu0 0.0
        %664 = vmatpush1.msra.mxu0 0.0
        %665 = vmatprep.subr.mxu0 0.0
        %666 = vmatpush1.msra.mxu0 0.0
        %667 = vmatprep.subr.mxu0 0.0
        %668 = vmatpush1.msra.mxu0 0.0
        %669 = vmatprep.subr.mxu0 0.0
        %670 = vmatpush1.msra.mxu0 0.0
        %671 = vmatprep.subr.mxu0 0.0
        %672 = vmatpush1.msra.mxu0 0.0
        %673 = vmatprep.subr.mxu0 0.0
        %674 = vmatpush1.msra.mxu0 0.0
        %675 = vmatprep.subr.mxu0 0.0
        %676 = vmatpush1.msra.mxu0 0.0
        %677 = vmatprep.subr.mxu0 0.0
        %678 = vmatpush1.msra.mxu0 0.0
        %679 = vmatprep.subr.mxu0 0.0
        %680 = vmatpush1.msra.mxu0 %v651
        %681 = vmatprep.subr.mxu0 0.0
        %682 = vmatpush1.msra.mxu0 %v650
        %683 = vmatprep.subr.mxu0 0.0
        %684 = vmatpush1.msra.mxu0 %v649
        %685 = vmatprep.subr.mxu0 0.0
        %686 = vmatpush1.msra.mxu0 %v648
        %687 = vmatprep.subr.mxu0 0.0
        %688 = vmatpush2.msra.mxu0 0.0
        %689 = vmatprep.subr.mxu0 0.0
        %690 = vmatpush2.msra.mxu0 0.0
        %691 = vmatprep.subr.mxu0 0.0
        %692 = vmatpush2.msra.mxu0 0.0
        %693 = vmatprep.subr.mxu0 0.0
        %694 = vmatpush2.msra.mxu0 0.0
        %695 = vmatprep.subr.mxu0 0.0
        %696 = vmatpush2.msra.mxu0 0.0
        %697 = vmatprep.subr.mxu0 0.0
        %698 = vmatpush2.msra.mxu0 0.0
        %699 = vmatprep.subr.mxu0 0.0
        %700 = vmatpush2.msra.mxu0 0.0
        %701 = vmatprep.subr.mxu0 0.0
        %702 = vmatpush2.msra.mxu0 0.0
        %703 = vmatprep.subr.mxu0 0.0
        %704 = vmatpush2.msra.mxu0 0.0
        %705 = vmatprep.subr.mxu0 0.0
        %706 = vmatpush2.msra.mxu0 0.0
        %707 = vmatprep.subr.mxu0 0.0
        %708 = vmatpush2.msra.mxu0 0.0
        %709 = vmatprep.subr.mxu0 0.0
        %710 = vmatpush2.msra.mxu0 0.0
        %711 = vmatprep.subr.mxu0 0.0
        %712 = vmatpush2.msra.mxu0 0.0
        %713 = vmatprep.subr.mxu0 0.0
        %714 = vmatpush2.msra.mxu0 0.0
        %715 = vmatprep.subr.mxu0 0.0
        %716 = vmatpush2.msra.mxu0 0.0
        %717 = vmatprep.subr.mxu0 0.0
        %718 = vmatpush2.msra.mxu0 0.0
        %719 = vmatprep.mubr.f32.mxu0 0.0
        %720 = vmatmul.mubr.f32.gmra.mxu0 %v653
        %v721 = vpop.f32.mrf.mxu0
        %v722 = vadd.f32 0.0, %v721
        %v723 = vpop.f32.mrf.mxu0
        %724 = vdwg.mxu0
        %v725 = vld [vmem:[%s442] sm:$0xff]
        %vm726 = vcmask 64512
        %v728 = vsel %vm726, %v568, 0
        %v731 = vsel %vm726, %v645, 0
        %733 = vmatprep.subr.mxu0 0.0
        %734 = vmatpush1.xpose.msra.mxu0 0.0
        %735 = vmatprep.subr.mxu0 0.0
        %736 = vmatpush1.xpose.msra.mxu0 0.0
        %737 = vmatprep.subr.mxu0 0.0
        %738 = vmatpush1.xpose.msra.mxu0 0.0
        %739 = vmatprep.subr.mxu0 0.0
        %740 = vmatpush1.xpose.msra.mxu0 0.0
        %741 = vmatprep.subr.mxu0 0.0
        %742 = vmatpush1.xpose.msra.mxu0 0.0
        %743 = vmatprep.subr.mxu0 0.0
        %744 = vmatpush1.xpose.msra.mxu0 0.0
        %745 = vmatprep.subr.mxu0 0.0
        %746 = vmatpush1.xpose.msra.mxu0 0.0
        %747 = vmatprep.subr.mxu0 0.0
        %748 = vmatpush1.xpose.msra.mxu0 0.0
        %749 = vmatprep.subr.mxu0 0.0
        %750 = vmatpush1.xpose.msra.mxu0 0.0
        %751 = vmatprep.subr.mxu0 0.0
        %752 = vmatpush1.xpose.msra.mxu0 0.0
        %753 = vmatprep.subr.mxu0 0.0
        %754 = vmatpush1.xpose.msra.mxu0 0.0
        %755 = vmatprep.subr.mxu0 0.0
        %756 = vmatpush1.xpose.msra.mxu0 0.0
        %757 = vmatprep.subr.mxu0 0.0
        %758 = vmatpush1.xpose.msra.mxu0 0.0
        %759 = vmatprep.subr.mxu0 0.0
        %760 = vmatpush1.xpose.msra.mxu0 0.0
        %761 = vmatprep.subr.mxu0 0.0
        %762 = vmatpush1.xpose.msra.mxu0 0.0
        %763 = vmatprep.subr.mxu0 0.0
        %764 = vmatpush1.xpose.msra.mxu0 %v731
        %765 = vmatprep.subr.mxu0 0.0
        %766 = vmatpush2.xpose.msra.mxu0 0.0
        %767 = vmatprep.subr.mxu0 0.0
        %768 = vmatpush2.xpose.msra.mxu0 0.0
        %769 = vmatprep.subr.mxu0 0.0
        %770 = vmatpush2.xpose.msra.mxu0 0.0
        %771 = vmatprep.subr.mxu0 0.0
        %772 = vmatpush2.xpose.msra.mxu0 0.0
        %773 = vmatprep.subr.mxu0 0.0
        %774 = vmatpush2.xpose.msra.mxu0 0.0
        %775 = vmatprep.subr.mxu0 0.0
        %776 = vmatpush2.xpose.msra.mxu0 0.0
        %777 = vmatprep.subr.mxu0 0.0
        %778 = vmatpush2.xpose.msra.mxu0 0.0
        %779 = vmatprep.subr.mxu0 0.0
        %780 = vmatpush2.xpose.msra.mxu0 0.0
        %781 = vmatprep.subr.mxu0 0.0
        %782 = vmatpush2.xpose.msra.mxu0 0.0
        %783 = vmatprep.subr.mxu0 0.0
        %784 = vmatpush2.xpose.msra.mxu0 0.0
        %785 = vmatprep.subr.mxu0 0.0
        %786 = vmatpush2.xpose.msra.mxu0 0.0
        %787 = vmatprep.subr.mxu0 0.0
        %788 = vmatpush2.xpose.msra.mxu0 0.0
        %789 = vmatprep.subr.mxu0 0.0
        %790 = vmatpush2.xpose.msra.mxu0 0.0
        %791 = vmatprep.subr.mxu0 0.0
        %792 = vmatpush2.xpose.msra.mxu0 0.0
        %793 = vmatprep.subr.mxu0 0.0
        %794 = vmatpush2.xpose.msra.mxu0 0.0
        %795 = vmatprep.subr.mxu0 0.0
        %796 = vmatpush2.xpose.msra.mxu0 0.0
        %797 = vmatprep.mubr.f32.mxu0 0.0
        %798 = vmatmul.mubr.f32.gmra.mxu0 %v728
        %v799 = vpop.f32.mrf.mxu0
        %v800 = vadd.f32 %v725, %v799
        %v801 = vpop.f32.mrf.mxu0
        %802 = vdwg.mxu0
        %v803 = vsel %vm726, %v800, -inf
        %804 = vmax.xlane.f32.xlu0 %v803
        %v805 = vpop.xlane.xlu0 %804
        %v806 = vsub.f32 %v800, %v805
        %v807 = vmul.f32 %v806, 1.442695
        %v808 = vpow.pop %v807
        %v809 = vsel %vm726, %v808, 0.0
        %810 = vadd.xlane.f32.xlu0 %v809
        %v811 = vpop.xlane.xlu0 %810
        %v812 = vrcp.pop %v811
        %v813 = vmul.f32 %v808, %v812
        %v815 = vsel %vm726, %v813, 0
        %817 = vmatprep.subr.mxu0 0.0
        %818 = vmatpush1.msra.mxu0 0.0
        %819 = vmatprep.subr.mxu0 0.0
        %820 = vmatpush1.msra.mxu0 0.0
        %821 = vmatprep.subr.mxu0 0.0
        %822 = vmatpush1.msra.mxu0 0.0
        %823 = vmatprep.subr.mxu0 0.0
        %824 = vmatpush1.msra.mxu0 0.0
        %825 = vmatprep.subr.mxu0 0.0
        %826 = vmatpush1.msra.mxu0 0.0
        %827 = vmatprep.subr.mxu0 0.0
        %828 = vmatpush1.msra.mxu0 0.0
        %829 = vmatprep.subr.mxu0 0.0
        %830 = vmatpush1.msra.mxu0 0.0
        %831 = vmatprep.subr.mxu0 0.0
        %832 = vmatpush1.msra.mxu0 0.0
        %833 = vmatprep.subr.mxu0 0.0
        %834 = vmatpush1.msra.mxu0 0.0
        %835 = vmatprep.subr.mxu0 0.0
        %836 = vmatpush1.msra.mxu0 0.0
        %837 = vmatprep.subr.mxu0 0.0
        %838 = vmatpush1.msra.mxu0 0.0
        %839 = vmatprep.subr.mxu0 0.0
        %840 = vmatpush1.msra.mxu0 0.0
        %841 = vmatprep.subr.mxu0 0.0
        %842 = vmatpush1.msra.mxu0 0.0
        %843 = vmatprep.subr.mxu0 0.0
        %844 = vmatpush1.msra.mxu0 0.0
        %845 = vmatprep.subr.mxu0 0.0
        %846 = vmatpush1.msra.mxu0 0.0
        %847 = vmatprep.subr.mxu0 0.0
        %848 = vmatpush1.msra.mxu0 %v722
        %849 = vmatprep.subr.mxu0 0.0
        %850 = vmatpush2.msra.mxu0 0.0
        %851 = vmatprep.subr.mxu0 0.0
        %852 = vmatpush2.msra.mxu0 0.0
        %853 = vmatprep.subr.mxu0 0.0
        %854 = vmatpush2.msra.mxu0 0.0
        %855 = vmatprep.subr.mxu0 0.0
        %856 = vmatpush2.msra.mxu0 0.0
        %857 = vmatprep.subr.mxu0 0.0
        %858 = vmatpush2.msra.mxu0 0.0
        %859 = vmatprep.subr.mxu0 0.0
        %860 = vmatpush2.msra.mxu0 0.0
        %861 = vmatprep.subr.mxu0 0.0
        %862 = vmatpush2.msra.mxu0 0.0
        %863 = vmatprep.subr.mxu0 0.0
        %864 = vmatpush2.msra.mxu0 0.0
        %865 = vmatprep.subr.mxu0 0.0
        %866 = vmatpush2.msra.mxu0 0.0
        %867 = vmatprep.subr.mxu0 0.0
        %868 = vmatpush2.msra.mxu0 0.0
        %869 = vmatprep.subr.mxu0 0.0
        %870 = vmatpush2.msra.mxu0 0.0
        %871 = vmatprep.subr.mxu0 0.0
        %872 = vmatpush2.msra.mxu0 0.0
        %873 = vmatprep.subr.mxu0 0.0
        %874 = vmatpush2.msra.mxu0 0.0
        %875 = vmatprep.subr.mxu0 0.0
        %876 = vmatpush2.msra.mxu0 0.0
        %877 = vmatprep.subr.mxu0 0.0
        %878 = vmatpush2.msra.mxu0 0.0
        %879 = vmatprep.subr.mxu0 0.0
        %880 = vmatpush2.msra.mxu0 0.0
        %881 = vmatprep.mubr.f32.mxu0 0.0
        %882 = vmatmul.mubr.f32.gmra.mxu0 %v815
        %v883 = vpop.f32.mrf.mxu0
        %v884 = vadd.f32 0.0, %v883
        %v885 = vpop.f32.mrf.mxu0
        %886 = vdwg.mxu0
        %s887 = scalar_lea.vmem %s442, 8 [#allocation14]
        %v888 = vld [vmem:[%s887] sm:$0xff]
        %889 = vrot.lane.b32.xlu0 %v568, 120
        %v890 = vpop.permute.xlu0 %889
        %891 = vrot.lane.b32.xlu0 %v645, 120
        %v892 = vpop.permute.xlu0 %891
        %v893 = vsel %vm726, %v890, 0
        %v895 = vsel %vm726, %v892, 0
        %897 = vmatprep.subr.mxu0 0.0
        %898 = vmatpush1.xpose.msra.mxu0 0.0
        %899 = vmatprep.subr.mxu0 0.0
        %900 = vmatpush1.xpose.msra.mxu0 0.0
        %901 = vmatprep.subr.mxu0 0.0
        %902 = vmatpush1.xpose.msra.mxu0 0.0
        %903 = vmatprep.subr.mxu0 0.0
        %904 = vmatpush1.xpose.msra.mxu0 0.0
        %905 = vmatprep.subr.mxu0 0.0
        %906 = vmatpush1.xpose.msra.mxu0 0.0
        %907 = vmatprep.subr.mxu0 0.0
        %908 = vmatpush1.xpose.msra.mxu0 0.0
        %909 = vmatprep.subr.mxu0 0.0
        %910 = vmatpush1.xpose.msra.mxu0 0.0
        %911 = vmatprep.subr.mxu0 0.0
        %912 = vmatpush1.xpose.msra.mxu0 0.0
        %913 = vmatprep.subr.mxu0 0.0
        %914 = vmatpush1.xpose.msra.mxu0 0.0
        %915 = vmatprep.subr.mxu0 0.0
        %916 = vmatpush1.xpose.msra.mxu0 0.0
        %917 = vmatprep.subr.mxu0 0.0
        %918 = vmatpush1.xpose.msra.mxu0 0.0
        %919 = vmatprep.subr.mxu0 0.0
        %920 = vmatpush1.xpose.msra.mxu0 0.0
        %921 = vmatprep.subr.mxu0 0.0
        %922 = vmatpush1.xpose.msra.mxu0 0.0
        %923 = vmatprep.subr.mxu0 0.0
        %924 = vmatpush1.xpose.msra.mxu0 0.0
        %925 = vmatprep.subr.mxu0 0.0
        %926 = vmatpush1.xpose.msra.mxu0 0.0
        %927 = vmatprep.subr.mxu0 0.0
        %928 = vmatpush1.xpose.msra.mxu0 %v895
        %929 = vmatprep.subr.mxu0 0.0
        %930 = vmatpush2.xpose.msra.mxu0 0.0
        %931 = vmatprep.subr.mxu0 0.0
        %932 = vmatpush2.xpose.msra.mxu0 0.0
        %933 = vmatprep.subr.mxu0 0.0
        %934 = vmatpush2.xpose.msra.mxu0 0.0
        %935 = vmatprep.subr.mxu0 0.0
        %936 = vmatpush2.xpose.msra.mxu0 0.0
        %937 = vmatprep.subr.mxu0 0.0
        %938 = vmatpush2.xpose.msra.mxu0 0.0
        %939 = vmatprep.subr.mxu0 0.0
        %940 = vmatpush2.xpose.msra.mxu0 0.0
        %941 = vmatprep.subr.mxu0 0.0
        %942 = vmatpush2.xpose.msra.mxu0 0.0
        %943 = vmatprep.subr.mxu0 0.0
        %944 = vmatpush2.xpose.msra.mxu0 0.0
        %945 = vmatprep.subr.mxu0 0.0
        %946 = vmatpush2.xpose.msra.mxu0 0.0
        %947 = vmatprep.subr.mxu0 0.0
        %948 = vmatpush2.xpose.msra.mxu0 0.0
        %949 = vmatprep.subr.mxu0 0.0
        %950 = vmatpush2.xpose.msra.mxu0 0.0
        %951 = vmatprep.subr.mxu0 0.0
        %952 = vmatpush2.xpose.msra.mxu0 0.0
        %953 = vmatprep.subr.mxu0 0.0
        %954 = vmatpush2.xpose.msra.mxu0 0.0
        %955 = vmatprep.subr.mxu0 0.0
        %956 = vmatpush2.xpose.msra.mxu0 0.0
        %957 = vmatprep.subr.mxu0 0.0
        %958 = vmatpush2.xpose.msra.mxu0 0.0
        %959 = vmatprep.subr.mxu0 0.0
        %960 = vmatpush2.xpose.msra.mxu0 0.0
        %961 = vmatprep.mubr.f32.mxu0 0.0
        %962 = vmatmul.mubr.f32.gmra.mxu0 %v893
        %v963 = vpop.f32.mrf.mxu0
        %v964 = vadd.f32 %v888, %v963
        %v965 = vpop.f32.mrf.mxu0
        %966 = vdwg.mxu0
        %v967 = vsel %vm726, %v964, -inf
        %968 = vmax.xlane.f32.xlu0 %v967
        %v969 = vpop.xlane.xlu0 %968
        %v970 = vsub.f32 %v964, %v969
        %v971 = vmul.f32 %v970, 1.442695
        %v972 = vpow.pop %v971
        %v973 = vsel %vm726, %v972, 0.0
        %974 = vadd.xlane.f32.xlu0 %v973
        %v975 = vpop.xlane.xlu0 %974
        %v976 = vrcp.pop %v975
        %v977 = vmul.f32 %v972, %v976
        %979 = vrot.lane.b32.xlu0 %v722, 120
        %v980 = vpop.permute.xlu0 %979
        %v983 = vsel %vm726, %v977, 0
        %985 = vmatprep.subr.mxu0 0.0
        %986 = vmatpush1.msra.mxu0 0.0
        %987 = vmatprep.subr.mxu0 0.0
        %988 = vmatpush1.msra.mxu0 0.0
        %989 = vmatprep.subr.mxu0 0.0
        %990 = vmatpush1.msra.mxu0 0.0
        %991 = vmatprep.subr.mxu0 0.0
        %992 = vmatpush1.msra.mxu0 0.0
        %993 = vmatprep.subr.mxu0 0.0
        %994 = vmatpush1.msra.mxu0 0.0
        %995 = vmatprep.subr.mxu0 0.0
        %996 = vmatpush1.msra.mxu0 0.0
        %997 = vmatprep.subr.mxu0 0.0
        %998 = vmatpush1.msra.mxu0 0.0
        %999 = vmatprep.subr.mxu0 0.0
        %1000 = vmatpush1.msra.mxu0 0.0
        %1001 = vmatprep.subr.mxu0 0.0
        %1002 = vmatpush1.msra.mxu0 0.0
        %1003 = vmatprep.subr.mxu0 0.0
        %1004 = vmatpush1.msra.mxu0 0.0
        %1005 = vmatprep.subr.mxu0 0.0
        %1006 = vmatpush1.msra.mxu0 0.0
        %1007 = vmatprep.subr.mxu0 0.0
        %1008 = vmatpush1.msra.mxu0 0.0
        %1009 = vmatprep.subr.mxu0 0.0
        %1010 = vmatpush1.msra.mxu0 0.0
        %1011 = vmatprep.subr.mxu0 0.0
        %1012 = vmatpush1.msra.mxu0 0.0
        %1013 = vmatprep.subr.mxu0 0.0
        %1014 = vmatpush1.msra.mxu0 0.0
        %1015 = vmatprep.subr.mxu0 0.0
        %1016 = vmatpush1.msra.mxu0 %v980
        %1017 = vmatprep.subr.mxu0 0.0
        %1018 = vmatpush2.msra.mxu0 0.0
        %1019 = vmatprep.subr.mxu0 0.0
        %1020 = vmatpush2.msra.mxu0 0.0
        %1021 = vmatprep.subr.mxu0 0.0
        %1022 = vmatpush2.msra.mxu0 0.0
        %1023 = vmatprep.subr.mxu0 0.0
        %1024 = vmatpush2.msra.mxu0 0.0
        %1025 = vmatprep.subr.mxu0 0.0
        %1026 = vmatpush2.msra.mxu0 0.0
        %1027 = vmatprep.subr.mxu0 0.0
        %1028 = vmatpush2.msra.mxu0 0.0
        %1029 = vmatprep.subr.mxu0 0.0
        %1030 = vmatpush2.msra.mxu0 0.0
        %1031 = vmatprep.subr.mxu0 0.0
        %1032 = vmatpush2.msra.mxu0 0.0
        %1033 = vmatprep.subr.mxu0 0.0
        %1034 = vmatpush2.msra.mxu0 0.0
        %1035 = vmatprep.subr.mxu0 0.0
        %1036 = vmatpush2.msra.mxu0 0.0
        %1037 = vmatprep.subr.mxu0 0.0
        %1038 = vmatpush2.msra.mxu0 0.0
        %1039 = vmatprep.subr.mxu0 0.0
        %1040 = vmatpush2.msra.mxu0 0.0
        %1041 = vmatprep.subr.mxu0 0.0
        %1042 = vmatpush2.msra.mxu0 0.0
        %1043 = vmatprep.subr.mxu0 0.0
        %1044 = vmatpush2.msra.mxu0 0.0
        %1045 = vmatprep.subr.mxu0 0.0
        %1046 = vmatpush2.msra.mxu0 0.0
        %1047 = vmatprep.subr.mxu0 0.0
        %1048 = vmatpush2.msra.mxu0 0.0
        %1049 = vmatprep.mubr.f32.mxu0 0.0
        %1050 = vmatmul.mubr.f32.gmra.mxu0 %v983
        %v1051 = vpop.f32.mrf.mxu0
        %v1052 = vadd.f32 0.0, %v1051
        %v1053 = vpop.f32.mrf.mxu0
        %1054 = vdwg.mxu0
        %s1055 = scalar_lea.vmem %s442, 16 [#allocation14]
        %v1056 = vld [vmem:[%s1055] sm:$0xff]
        %1057 = vrot.lane.b32.xlu0 %v568, 112
        %v1058 = vpop.permute.xlu0 %1057
        %1059 = vrot.lane.b32.xlu0 %v645, 112
        %v1060 = vpop.permute.xlu0 %1059
        %v1061 = vsel %vm726, %v1058, 0
        %v1063 = vsel %vm726, %v1060, 0
        %1065 = vmatprep.subr.mxu0 0.0
        %1066 = vmatpush1.xpose.msra.mxu0 0.0
        %1067 = vmatprep.subr.mxu0 0.0
        %1068 = vmatpush1.xpose.msra.mxu0 0.0
        %1069 = vmatprep.subr.mxu0 0.0
        %1070 = vmatpush1.xpose.msra.mxu0 0.0
        %1071 = vmatprep.subr.mxu0 0.0
        %1072 = vmatpush1.xpose.msra.mxu0 0.0
        %1073 = vmatprep.subr.mxu0 0.0
        %1074 = vmatpush1.xpose.msra.mxu0 0.0
        %1075 = vmatprep.subr.mxu0 0.0
        %1076 = vmatpush1.xpose.msra.mxu0 0.0
        %1077 = vmatprep.subr.mxu0 0.0
        %1078 = vmatpush1.xpose.msra.mxu0 0.0
        %1079 = vmatprep.subr.mxu0 0.0
        %1080 = vmatpush1.xpose.msra.mxu0 0.0
        %1081 = vmatprep.subr.mxu0 0.0
        %1082 = vmatpush1.xpose.msra.mxu0 0.0
        %1083 = vmatprep.subr.mxu0 0.0
        %1084 = vmatpush1.xpose.msra.mxu0 0.0
        %1085 = vmatprep.subr.mxu0 0.0
        %1086 = vmatpush1.xpose.msra.mxu0 0.0
        %1087 = vmatprep.subr.mxu0 0.0
        %1088 = vmatpush1.xpose.msra.mxu0 0.0
        %1089 = vmatprep.subr.mxu0 0.0
        %1090 = vmatpush1.xpose.msra.mxu0 0.0
        %1091 = vmatprep.subr.mxu0 0.0
        %1092 = vmatpush1.xpose.msra.mxu0 0.0
        %1093 = vmatprep.subr.mxu0 0.0
        %1094 = vmatpush1.xpose.msra.mxu0 0.0
        %1095 = vmatprep.subr.mxu0 0.0
        %1096 = vmatpush1.xpose.msra.mxu0 %v1063
        %1097 = vmatprep.subr.mxu0 0.0
        %1098 = vmatpush2.xpose.msra.mxu0 0.0
        %1099 = vmatprep.subr.mxu0 0.0
        %1100 = vmatpush2.xpose.msra.mxu0 0.0
        %1101 = vmatprep.subr.mxu0 0.0
        %1102 = vmatpush2.xpose.msra.mxu0 0.0
        %1103 = vmatprep.subr.mxu0 0.0
        %1104 = vmatpush2.xpose.msra.mxu0 0.0
        %1105 = vmatprep.subr.mxu0 0.0
        %1106 = vmatpush2.xpose.msra.mxu0 0.0
        %1107 = vmatprep.subr.mxu0 0.0
        %1108 = vmatpush2.xpose.msra.mxu0 0.0
        %1109 = vmatprep.subr.mxu0 0.0
        %1110 = vmatpush2.xpose.msra.mxu0 0.0
        %1111 = vmatprep.subr.mxu0 0.0
        %1112 = vmatpush2.xpose.msra.mxu0 0.0
        %1113 = vmatprep.subr.mxu0 0.0
        %1114 = vmatpush2.xpose.msra.mxu0 0.0
        %1115 = vmatprep.subr.mxu0 0.0
        %1116 = vmatpush2.xpose.msra.mxu0 0.0
        %1117 = vmatprep.subr.mxu0 0.0
        %1118 = vmatpush2.xpose.msra.mxu0 0.0
        %1119 = vmatprep.subr.mxu0 0.0
        %1120 = vmatpush2.xpose.msra.mxu0 0.0
        %1121 = vmatprep.subr.mxu0 0.0
        %1122 = vmatpush2.xpose.msra.mxu0 0.0
        %1123 = vmatprep.subr.mxu0 0.0
        %1124 = vmatpush2.xpose.msra.mxu0 0.0
        %1125 = vmatprep.subr.mxu0 0.0
        %1126 = vmatpush2.xpose.msra.mxu0 0.0
        %1127 = vmatprep.subr.mxu0 0.0
        %1128 = vmatpush2.xpose.msra.mxu0 0.0
        %1129 = vmatprep.mubr.f32.mxu0 0.0
        %1130 = vmatmul.mubr.f32.gmra.mxu0 %v1061
        %v1131 = vpop.f32.mrf.mxu0
        %v1132 = vadd.f32 %v1056, %v1131
        %v1133 = vpop.f32.mrf.mxu0
        %1134 = vdwg.mxu0
        %v1135 = vsel %vm726, %v1132, -inf
        %1136 = vmax.xlane.f32.xlu0 %v1135
        %v1137 = vpop.xlane.xlu0 %1136
        %v1138 = vsub.f32 %v1132, %v1137
        %v1139 = vmul.f32 %v1138, 1.442695
        %v1140 = vpow.pop %v1139
        %v1141 = vsel %vm726, %v1140, 0.0
        %1142 = vadd.xlane.f32.xlu0 %v1141
        %v1143 = vpop.xlane.xlu0 %1142
        %v1144 = vrcp.pop %v1143
        %v1145 = vmul.f32 %v1140, %v1144
        %1146 = vrot.lane.b32.xlu0 %v722, 112
        %v1147 = vpop.permute.xlu0 %1146
        %v1150 = vsel %vm726, %v1145, 0
        %1152 = vmatprep.subr.mxu0 0.0
        %1153 = vmatpush1.msra.mxu0 0.0
        %1154 = vmatprep.subr.mxu0 0.0
        %1155 = vmatpush1.msra.mxu0 0.0
        %1156 = vmatprep.subr.mxu0 0.0
        %1157 = vmatpush1.msra.mxu0 0.0
        %1158 = vmatprep.subr.mxu0 0.0
        %1159 = vmatpush1.msra.mxu0 0.0
        %1160 = vmatprep.subr.mxu0 0.0
        %1161 = vmatpush1.msra.mxu0 0.0
        %1162 = vmatprep.subr.mxu0 0.0
        %1163 = vmatpush1.msra.mxu0 0.0
        %1164 = vmatprep.subr.mxu0 0.0
        %1165 = vmatpush1.msra.mxu0 0.0
        %1166 = vmatprep.subr.mxu0 0.0
        %1167 = vmatpush1.msra.mxu0 0.0
        %1168 = vmatprep.subr.mxu0 0.0
        %1169 = vmatpush1.msra.mxu0 0.0
        %1170 = vmatprep.subr.mxu0 0.0
        %1171 = vmatpush1.msra.mxu0 0.0
        %1172 = vmatprep.subr.mxu0 0.0
        %1173 = vmatpush1.msra.mxu0 0.0
        %1174 = vmatprep.subr.mxu0 0.0
        %1175 = vmatpush1.msra.mxu0 0.0
        %1176 = vmatprep.subr.mxu0 0.0
        %1177 = vmatpush1.msra.mxu0 0.0
        %1178 = vmatprep.subr.mxu0 0.0
        %1179 = vmatpush1.msra.mxu0 0.0
        %1180 = vmatprep.subr.mxu0 0.0
        %1181 = vmatpush1.msra.mxu0 0.0
        %1182 = vmatprep.subr.mxu0 0.0
        %1183 = vmatpush1.msra.mxu0 %v1147
        %1184 = vmatprep.subr.mxu0 0.0
        %1185 = vmatpush2.msra.mxu0 0.0
        %1186 = vmatprep.subr.mxu0 0.0
        %1187 = vmatpush2.msra.mxu0 0.0
        %1188 = vmatprep.subr.mxu0 0.0
        %1189 = vmatpush2.msra.mxu0 0.0
        %1190 = vmatprep.subr.mxu0 0.0
        %1191 = vmatpush2.msra.mxu0 0.0
        %1192 = vmatprep.subr.mxu0 0.0
        %1193 = vmatpush2.msra.mxu0 0.0
        %1194 = vmatprep.subr.mxu0 0.0
        %1195 = vmatpush2.msra.mxu0 0.0
        %1196 = vmatprep.subr.mxu0 0.0
        %1197 = vmatpush2.msra.mxu0 0.0
        %1198 = vmatprep.subr.mxu0 0.0
        %1199 = vmatpush2.msra.mxu0 0.0
        %1200 = vmatprep.subr.mxu0 0.0
        %1201 = vmatpush2.msra.mxu0 0.0
        %1202 = vmatprep.subr.mxu0 0.0
        %1203 = vmatpush2.msra.mxu0 0.0
        %1204 = vmatprep.subr.mxu0 0.0
        %1205 = vmatpush2.msra.mxu0 0.0
        %1206 = vmatprep.subr.mxu0 0.0
        %1207 = vmatpush2.msra.mxu0 0.0
        %1208 = vmatprep.subr.mxu0 0.0
        %1209 = vmatpush2.msra.mxu0 0.0
        %1210 = vmatprep.subr.mxu0 0.0
        %1211 = vmatpush2.msra.mxu0 0.0
        %1212 = vmatprep.subr.mxu0 0.0
        %1213 = vmatpush2.msra.mxu0 0.0
        %1214 = vmatprep.subr.mxu0 0.0
        %1215 = vmatpush2.msra.mxu0 0.0
        %1216 = vmatprep.mubr.f32.mxu0 0.0
        %1217 = vmatmul.mubr.f32.gmra.mxu0 %v1150
        %v1218 = vpop.f32.mrf.mxu0
        %v1219 = vadd.f32 0.0, %v1218
        %v1220 = vpop.f32.mrf.mxu0
        %1221 = vdwg.mxu0
        %s1222 = scalar_lea.vmem %s442, 24 [#allocation14]
        %v1223 = vld [vmem:[%s1222] sm:$0xff]
        %1224 = vrot.lane.b32.xlu0 %v568, 104
        %v1225 = vpop.permute.xlu0 %1224
        %1226 = vrot.lane.b32.xlu0 %v645, 104
        %v1227 = vpop.permute.xlu0 %1226
        %v1228 = vsel %vm726, %v1225, 0
        %v1230 = vsel %vm726, %v1227, 0
        %1232 = vmatprep.subr.mxu0 0.0
        %1233 = vmatpush1.xpose.msra.mxu0 0.0
        %1234 = vmatprep.subr.mxu0 0.0
        %1235 = vmatpush1.xpose.msra.mxu0 0.0
        %1236 = vmatprep.subr.mxu0 0.0
        %1237 = vmatpush1.xpose.msra.mxu0 0.0
        %1238 = vmatprep.subr.mxu0 0.0
        %1239 = vmatpush1.xpose.msra.mxu0 0.0
        %1240 = vmatprep.subr.mxu0 0.0
        %1241 = vmatpush1.xpose.msra.mxu0 0.0
        %1242 = vmatprep.subr.mxu0 0.0
        %1243 = vmatpush1.xpose.msra.mxu0 0.0
        %1244 = vmatprep.subr.mxu0 0.0
        %1245 = vmatpush1.xpose.msra.mxu0 0.0
        %1246 = vmatprep.subr.mxu0 0.0
        %1247 = vmatpush1.xpose.msra.mxu0 0.0
        %1248 = vmatprep.subr.mxu0 0.0
        %1249 = vmatpush1.xpose.msra.mxu0 0.0
        %1250 = vmatprep.subr.mxu0 0.0
        %1251 = vmatpush1.xpose.msra.mxu0 0.0
        %1252 = vmatprep.subr.mxu0 0.0
        %1253 = vmatpush1.xpose.msra.mxu0 0.0
        %1254 = vmatprep.subr.mxu0 0.0
        %1255 = vmatpush1.xpose.msra.mxu0 0.0
        %1256 = vmatprep.subr.mxu0 0.0
        %1257 = vmatpush1.xpose.msra.mxu0 0.0
        %1258 = vmatprep.subr.mxu0 0.0
        %1259 = vmatpush1.xpose.msra.mxu0 0.0
        %1260 = vmatprep.subr.mxu0 0.0
        %1261 = vmatpush1.xpose.msra.mxu0 0.0
        %1262 = vmatprep.subr.mxu0 0.0
        %1263 = vmatpush1.xpose.msra.mxu0 %v1230
        %1264 = vmatprep.subr.mxu0 0.0
        %1265 = vmatpush2.xpose.msra.mxu0 0.0
        %1266 = vmatprep.subr.mxu0 0.0
        %1267 = vmatpush2.xpose.msra.mxu0 0.0
        %1268 = vmatprep.subr.mxu0 0.0
        %1269 = vmatpush2.xpose.msra.mxu0 0.0
        %1270 = vmatprep.subr.mxu0 0.0
        %1271 = vmatpush2.xpose.msra.mxu0 0.0
        %1272 = vmatprep.subr.mxu0 0.0
        %1273 = vmatpush2.xpose.msra.mxu0 0.0
        %1274 = vmatprep.subr.mxu0 0.0
        %1275 = vmatpush2.xpose.msra.mxu0 0.0
        %1276 = vmatprep.subr.mxu0 0.0
        %1277 = vmatpush2.xpose.msra.mxu0 0.0
        %1278 = vmatprep.subr.mxu0 0.0
        %1279 = vmatpush2.xpose.msra.mxu0 0.0
        %1280 = vmatprep.subr.mxu0 0.0
        %1281 = vmatpush2.xpose.msra.mxu0 0.0
        %1282 = vmatprep.subr.mxu0 0.0
        %1283 = vmatpush2.xpose.msra.mxu0 0.0
        %1284 = vmatprep.subr.mxu0 0.0
        %1285 = vmatpush2.xpose.msra.mxu0 0.0
        %1286 = vmatprep.subr.mxu0 0.0
        %1287 = vmatpush2.xpose.msra.mxu0 0.0
        %1288 = vmatprep.subr.mxu0 0.0
        %1289 = vmatpush2.xpose.msra.mxu0 0.0
        %1290 = vmatprep.subr.mxu0 0.0
        %1291 = vmatpush2.xpose.msra.mxu0 0.0
        %1292 = vmatprep.subr.mxu0 0.0
        %1293 = vmatpush2.xpose.msra.mxu0 0.0
        %1294 = vmatprep.subr.mxu0 0.0
        %1295 = vmatpush2.xpose.msra.mxu0 0.0
        %1296 = vmatprep.mubr.f32.mxu0 0.0
        %1297 = vmatmul.mubr.f32.gmra.mxu0 %v1228
        %v1298 = vpop.f32.mrf.mxu0
        %v1299 = vadd.f32 %v1223, %v1298
        %v1300 = vpop.f32.mrf.mxu0
        %1301 = vdwg.mxu0
        %v1302 = vsel %vm726, %v1299, -inf
        %1303 = vmax.xlane.f32.xlu0 %v1302
        %v1304 = vpop.xlane.xlu0 %1303
        %v1305 = vsub.f32 %v1299, %v1304
        %v1306 = vmul.f32 %v1305, 1.442695
        %v1307 = vpow.pop %v1306
        %v1308 = vsel %vm726, %v1307, 0.0
        %1309 = vadd.xlane.f32.xlu0 %v1308
        %v1310 = vpop.xlane.xlu0 %1309
        %v1311 = vrcp.pop %v1310
        %v1312 = vmul.f32 %v1307, %v1311
        %1313 = vrot.lane.b32.xlu0 %v722, 104
        %v1314 = vpop.permute.xlu0 %1313
        %v1317 = vsel %vm726, %v1312, 0
        %1319 = vmatprep.subr.mxu0 0.0
        %1320 = vmatpush1.msra.mxu0 0.0
        %1321 = vmatprep.subr.mxu0 0.0
        %1322 = vmatpush1.msra.mxu0 0.0
        %1323 = vmatprep.subr.mxu0 0.0
        %1324 = vmatpush1.msra.mxu0 0.0
        %1325 = vmatprep.subr.mxu0 0.0
        %1326 = vmatpush1.msra.mxu0 0.0
        %1327 = vmatprep.subr.mxu0 0.0
        %1328 = vmatpush1.msra.mxu0 0.0
        %1329 = vmatprep.subr.mxu0 0.0
        %1330 = vmatpush1.msra.mxu0 0.0
        %1331 = vmatprep.subr.mxu0 0.0
        %1332 = vmatpush1.msra.mxu0 0.0
        %1333 = vmatprep.subr.mxu0 0.0
        %1334 = vmatpush1.msra.mxu0 0.0
        %1335 = vmatprep.subr.mxu0 0.0
        %1336 = vmatpush1.msra.mxu0 0.0
        %1337 = vmatprep.subr.mxu0 0.0
        %1338 = vmatpush1.msra.mxu0 0.0
        %1339 = vmatprep.subr.mxu0 0.0
        %1340 = vmatpush1.msra.mxu0 0.0
        %1341 = vmatprep.subr.mxu0 0.0
        %1342 = vmatpush1.msra.mxu0 0.0
        %1343 = vmatprep.subr.mxu0 0.0
        %1344 = vmatpush1.msra.mxu0 0.0
        %1345 = vmatprep.subr.mxu0 0.0
        %1346 = vmatpush1.msra.mxu0 0.0
        %1347 = vmatprep.subr.mxu0 0.0
        %1348 = vmatpush1.msra.mxu0 0.0
        %1349 = vmatprep.subr.mxu0 0.0
        %1350 = vmatpush1.msra.mxu0 %v1314
        %1351 = vmatprep.subr.mxu0 0.0
        %1352 = vmatpush2.msra.mxu0 0.0
        %1353 = vmatprep.subr.mxu0 0.0
        %1354 = vmatpush2.msra.mxu0 0.0
        %1355 = vmatprep.subr.mxu0 0.0
        %1356 = vmatpush2.msra.mxu0 0.0
        %1357 = vmatprep.subr.mxu0 0.0
        %1358 = vmatpush2.msra.mxu0 0.0
        %1359 = vmatprep.subr.mxu0 0.0
        %1360 = vmatpush2.msra.mxu0 0.0
        %1361 = vmatprep.subr.mxu0 0.0
        %1362 = vmatpush2.msra.mxu0 0.0
        %1363 = vmatprep.subr.mxu0 0.0
        %1364 = vmatpush2.msra.mxu0 0.0
        %1365 = vmatprep.subr.mxu0 0.0
        %1366 = vmatpush2.msra.mxu0 0.0
        %1367 = vmatprep.subr.mxu0 0.0
        %1368 = vmatpush2.msra.mxu0 0.0
        %1369 = vmatprep.subr.mxu0 0.0
        %1370 = vmatpush2.msra.mxu0 0.0
        %1371 = vmatprep.subr.mxu0 0.0
        %1372 = vmatpush2.msra.mxu0 0.0
        %1373 = vmatprep.subr.mxu0 0.0
        %1374 = vmatpush2.msra.mxu0 0.0
        %1375 = vmatprep.subr.mxu0 0.0
        %1376 = vmatpush2.msra.mxu0 0.0
        %1377 = vmatprep.subr.mxu0 0.0
        %1378 = vmatpush2.msra.mxu0 0.0
        %1379 = vmatprep.subr.mxu0 0.0
        %1380 = vmatpush2.msra.mxu0 0.0
        %1381 = vmatprep.subr.mxu0 0.0
        %1382 = vmatpush2.msra.mxu0 0.0
        %1383 = vmatprep.mubr.f32.mxu0 0.0
        %1384 = vmatmul.mubr.f32.gmra.mxu0 %v1317
        %v1385 = vpop.f32.mrf.mxu0
        %v1386 = vadd.f32 0.0, %v1385
        %v1387 = vpop.f32.mrf.mxu0
        %1388 = vdwg.mxu0
        %1390 = vrot.lane.b32.xlu0 %v1052, 8
        %v1391 = vpop.permute.xlu0 %1390
        %1394 = vrot.lane.b32.xlu0 %v1219, 16
        %v1395 = vpop.permute.xlu0 %1394
        %1398 = vrot.lane.b32.xlu0 %v1386, 24
        %v1399 = vpop.permute.xlu0 %1398
        %v1401 = vsel %vm726, %v884, %v1391
        %vm1402 = vcmask 130048
        %v1403 = vsel %vm1402, %v1401, %v1395
        %vm1404 = vcmask 195584
        %v1405 = vsel %vm1404, %v1403, %v1399
        %v1406 = vld [vmem:[#allocation13] sm:$0xff]
        %v1407 = vld [vmem:[#allocation13 + $0x8] sm:$0xff]
        %v1408 = vld [vmem:[#allocation13 + $0x10] sm:$0xff]
        %v1409 = vld [vmem:[#allocation13 + $0x18] sm:$0xff]
        %v1411 = vsel %vm497, %v1405, 0
        %1413 = vmatprep.subr.mxu0 0.0
        %1414 = vmatpush1.msra.mxu0 0.0
        %1415 = vmatprep.subr.mxu0 0.0
        %1416 = vmatpush1.msra.mxu0 0.0
        %1417 = vmatprep.subr.mxu0 0.0
        %1418 = vmatpush1.msra.mxu0 0.0
        %1419 = vmatprep.subr.mxu0 0.0
        %1420 = vmatpush1.msra.mxu0 0.0
        %1421 = vmatprep.subr.mxu0 0.0
        %1422 = vmatpush1.msra.mxu0 0.0
        %1423 = vmatprep.subr.mxu0 0.0
        %1424 = vmatpush1.msra.mxu0 0.0
        %1425 = vmatprep.subr.mxu0 0.0
        %1426 = vmatpush1.msra.mxu0 0.0
        %1427 = vmatprep.subr.mxu0 0.0
        %1428 = vmatpush1.msra.mxu0 0.0
        %1429 = vmatprep.subr.mxu0 0.0
        %1430 = vmatpush1.msra.mxu0 0.0
        %1431 = vmatprep.subr.mxu0 0.0
        %1432 = vmatpush1.msra.mxu0 0.0
        %1433 = vmatprep.subr.mxu0 0.0
        %1434 = vmatpush1.msra.mxu0 0.0
        %1435 = vmatprep.subr.mxu0 0.0
        %1436 = vmatpush1.msra.mxu0 0.0
        %1437 = vmatprep.subr.mxu0 0.0
        %1438 = vmatpush1.msra.mxu0 %v1409
        %1439 = vmatprep.subr.mxu0 0.0
        %1440 = vmatpush1.msra.mxu0 %v1408
        %1441 = vmatprep.subr.mxu0 0.0
        %1442 = vmatpush1.msra.mxu0 %v1407
        %1443 = vmatprep.subr.mxu0 0.0
        %1444 = vmatpush1.msra.mxu0 %v1406
        %1445 = vmatprep.subr.mxu0 0.0
        %1446 = vmatpush2.msra.mxu0 0.0
        %1447 = vmatprep.subr.mxu0 0.0
        %1448 = vmatpush2.msra.mxu0 0.0
        %1449 = vmatprep.subr.mxu0 0.0
        %1450 = vmatpush2.msra.mxu0 0.0
        %1451 = vmatprep.subr.mxu0 0.0
        %1452 = vmatpush2.msra.mxu0 0.0
        %1453 = vmatprep.subr.mxu0 0.0
        %1454 = vmatpush2.msra.mxu0 0.0
        %1455 = vmatprep.subr.mxu0 0.0
        %1456 = vmatpush2.msra.mxu0 0.0
        %1457 = vmatprep.subr.mxu0 0.0
        %1458 = vmatpush2.msra.mxu0 0.0
        %1459 = vmatprep.subr.mxu0 0.0
        %1460 = vmatpush2.msra.mxu0 0.0
        %1461 = vmatprep.subr.mxu0 0.0
        %1462 = vmatpush2.msra.mxu0 0.0
        %1463 = vmatprep.subr.mxu0 0.0
        %1464 = vmatpush2.msra.mxu0 0.0
        %1465 = vmatprep.subr.mxu0 0.0
        %1466 = vmatpush2.msra.mxu0 0.0
        %1467 = vmatprep.subr.mxu0 0.0
        %1468 = vmatpush2.msra.mxu0 0.0
        %1469 = vmatprep.subr.mxu0 0.0
        %1470 = vmatpush2.msra.mxu0 0.0
        %1471 = vmatprep.subr.mxu0 0.0
        %1472 = vmatpush2.msra.mxu0 0.0
        %1473 = vmatprep.subr.mxu0 0.0
        %1474 = vmatpush2.msra.mxu0 0.0
        %1475 = vmatprep.subr.mxu0 0.0
        %1476 = vmatpush2.msra.mxu0 0.0
        %1477 = vmatprep.mubr.f32.mxu0 0.0
        %1478 = vmatmul.mubr.f32.gmra.mxu0 %v1411
        %v1479 = vpop.f32.mrf.mxu0
        %v1480 = vadd.f32 0.0, %v1479
        %v1481 = vpop.f32.mrf.mxu0
        %1482 = vdwg.mxu0
        %v1483 = vadd.f32 %v490, %v1480
        %1484 = vst.msk [vmem:[%s489] sm:$0xff] %vm497, %v1483
        %s1485 = sand.u32 %s229, 1
        %s1486 = scalar_lea.sflag [#allocation4], %s1485
        %s1487 = sand.u32 %s229, 1
        %s1488 = smul.addr %s1487, 8
        %s1489 = scalar_lea.vmem [#allocation16], %s1488
        // Predicated region
        $region85: #{tpu_custom_call.1} parent=51 // pred_check
          %p1490 = pneg %p239
        $region86: #{tpu_custom_call.1} parent=51 // pred_check_branch
          %1492 = sbr.rel (%p1490) target = $region88
        $region87: #{tpu_custom_call.1} parent=51 // pred_region
          %s1494 = ssub.s32 128, 128
          %1495 = vsyncadd %s1486, %s1494
          %s1496 = smul.addr %s33, 128
          %s1497 = scalar_lea.hbm %s8, %s1496
          %s1499 = sshll.u32 %s1489, 4
          %s1500 = int_to_ptr.vmem [resolvable:$true] %s1499
          %1502 = dma.vmem_to_hbm [thread:$0]  %s1500, 128, %s1497, %s1486
        $region88: #{tpu_custom_call.1} parent=51 // pred_fallthru
          _
      $region52: #{tpu_custom_call.1} parent=5 // pred_fallthru
        _
      %p1503 = scmp.le.s32.totalorder 2, %s28
      // Predicated region
      $region89: #{tpu_custom_call.1} parent=5 // pred_check
        %p1504 = pneg %p1503
      $region90: #{tpu_custom_call.1} parent=5 // pred_check_branch
        %1506 = sbr.rel (%p1504) target = $region92
      $region91: #{tpu_custom_call.1} parent=5 // pred_region
        %s1507 = ssub.s32 %s28, 2
        // Predicated region
        $region93: #{tpu_custom_call.1} parent=91 // pred_check
          %p1508 = pneg %p245
        $region94: #{tpu_custom_call.1} parent=91 // pred_check_branch
          %1510 = sbr.rel (%p1508) target = $region96
        $region95: #{tpu_custom_call.1} parent=91 // pred_region
          %s1511 = sand.u32 %s230, 1
          %s1512 = scalar_lea.sflag [#allocation4], %s1511
          %s1513 = sand.u32 %s230, 1
          %s1514 = smul.addr %s1513, 8
          %s1515 = scalar_lea.vmem [#allocation16], %s1514
          %1516 = dma.done %s1512, 128
        $region96: #{tpu_custom_call.1} parent=91 // pred_fallthru
          _
      $region92: #{tpu_custom_call.1} parent=5 // pred_fallthru
        _
    $region6: #{tpu_custom_call.1} parent=1 // loop_footer
      %s32 = sadd.s32 1, %s28
    $region7: #{tpu_custom_call.1} parent=1 // loop_footer_branch
      %27 = sbr.rel target = $region3
    $region8: #{tpu_custom_call.1} parent=1 // loop_exit
      _
    %1517 = vsyncpa [#allocation3], 1
    %s1518 = scalar_lea.sflag [#allocation3], 1
    %1519 = vsyncpa %s1518, 1
    %1520 = vsyncpa [#allocation6], 1
    %s1521 = scalar_lea.sflag [#allocation6], 1
    %1522 = vsyncpa %s1521, 1
    %1523 = vsyncpa [#allocation9], 1
    %1524 = vsyncpa [#allocation12], 1
    %1525 = vsyncpa [#allocation15], 1
    %s1526 = scalar_lea.sflag [#allocation15], 1
    %1527 = vsyncpa %s1526, 1
    %1528 = vsyncpa [#allocation4], 1
    %s1529 = scalar_lea.sflag [#allocation4], 1
    %1530 = vsyncpa %s1529, 1

</llo_original>
